<compile_context>
chip_gen: v7x
topology: tpu7x:2x2x1
jax: 0.10.0
libtpu: 0.0.40
codegen_flags: <defaults>
</compile_context>

<pallas_src>
import functools

import jax
import jax.numpy as jnp
from jax.experimental import pallas as pl
from jax.experimental.pallas import tpu as pltpu


def _round_up(x, m):
    return ((x + m - 1) // m) * m


def _pick_time_chunk(T, cap=64):
    """Largest chunk <= cap that divides T and keeps blocks (8,128)-legal."""
    if T <= cap:
        return T
    best = None
    for c in range(8, cap + 1, 8):
        if T % c == 0:
            best = c
    return best if best is not None else T  # fallback: whole sequence in one block


# ----------------------------------------------------------------------------
# Generic fused matmul + bias Pallas kernel (used for input & output projection)
# ----------------------------------------------------------------------------
def _matmul_bias_kernel(x_ref, w_ref, b_ref, o_ref):
    o_ref[...] = (jnp.dot(x_ref[...], w_ref[...],
                          preferred_element_type=jnp.float32)
                  + b_ref[...]).astype(o_ref.dtype)


def _matmul_bias(x, w, b, *, tm_cap=256, tn_cap=512):
    """(M, K) @ (K, N) + (N,) -> (M, N), f32, tiled over rows and N."""
    M, K = x.shape
    K2, N = w.shape
    assert K == K2
    tm = min(tm_cap, _round_up(M, 8))
    tn = min(tn_cap, _round_up(N, 128))
    m_pad = _round_up(M, tm)
    n_pad = _round_up(N, tn)

    x_p = jnp.pad(x, ((0, m_pad - M), (0, 0)))
    w_p = jnp.pad(w, ((0, 0), (0, n_pad - N)))
    b_p = jnp.pad(b, (0, n_pad - N)).reshape(1, n_pad)

    out = pl.pallas_call(
        _matmul_bias_kernel,
        out_shape=jax.ShapeDtypeStruct((m_pad, n_pad), jnp.float32),
        grid_spec=pltpu.PrefetchScalarGridSpec(
            num_scalar_prefetch=0,
            grid=(m_pad // tm, n_pad // tn),
            in_specs=[
                pl.BlockSpec((tm, K), lambda i, j: (i, 0)),
                pl.BlockSpec((K, tn), lambda i, j: (0, j)),
                pl.BlockSpec((1, tn), lambda i, j: (0, j)),
            ],
            out_specs=pl.BlockSpec((tm, tn), lambda i, j: (i, j)),
        ),
        compiler_params=pltpu.CompilerParams(
            dimension_semantics=("parallel", "parallel")),
    )(x_p, w_p, b_p)
    return out[:M, :N]


# ----------------------------------------------------------------------------
# Recurrent LSTM kernel: only h @ W_hh^T stays inside the serial loop.
# gates_in already contains x @ W_ih^T + (b_ih + b_hh), padded to 4*HP lanes.
# ----------------------------------------------------------------------------
def _lstm_recurrent_kernel(gin_ref, whh_ref, hs_ref, hn_ref, cn_ref,
                           *, hp, t_chunk):
    t = pl.program_id(1)   # time-chunk index (sequential / "arbitrary")

    @pl.when(t == 0)
    def _():
        hn_ref[...] = jnp.zeros_like(hn_ref)
        cn_ref[...] = jnp.zeros_like(cn_ref)

    whh = whh_ref[...]                 # (HP, 4*HP), resident
    h = hn_ref[0]                      # (b_blk, HP)  running state lives in the
    c = cn_ref[0]                      # resident output blocks (no scratch)

    for s in range(t_chunk):           # static unrolled inner time loop
        gates = gin_ref[:, s, :] + jnp.dot(h, whh,
                                           preferred_element_type=jnp.float32)
        # 128-aligned gate slices (HP is a multiple of 128), order i, f, g, o.
        i_g = jax.nn.sigmoid(gates[:, 0 * hp:1 * hp])
        f_g = jax.nn.sigmoid(gates[:, 1 * hp:2 * hp])
        g_g = jnp.tanh(gates[:, 2 * hp:3 * hp])
        o_g = jax.nn.sigmoid(gates[:, 3 * hp:4 * hp])
        c = f_g * c + i_g * g_g
        h = o_g * jnp.tanh(c)
        hs_ref[:, pl.ds(s, 1), :] = h[:, None, :]

    hn_ref[0] = h
    cn_ref[0] = c


def _lstm_recurrence(gates_in, whh_t, *, hidden_pad):
    """gates_in: (B, T, 4*HP) f32; whh_t: (HP, 4*HP) f32.
    Returns hs (B, T, HP), h_n (B, HP), c_n (B, HP)."""
    B, T, G = gates_in.shape
    HP = hidden_pad
    assert G == 4 * HP

    nb = 2 if (B >= 2 and B % 2 == 0) else 1   # batch-parallel axis (2nd TC on v7x)
    b_blk = B // nb
    t_chunk = _pick_time_chunk(T)
    nt = T // t_chunk

    kernel = functools.partial(_lstm_recurrent_kernel, hp=HP, t_chunk=t_chunk)

    hs, h_n, c_n = pl.pallas_call(
        kernel,
        out_shape=(
            jax.ShapeDtypeStruct((B, T, HP), jnp.float32),
            jax.ShapeDtypeStruct((nb, b_blk, HP), jnp.float32),
            jax.ShapeDtypeStruct((nb, b_blk, HP), jnp.float32),
        ),
        grid_spec=pltpu.PrefetchScalarGridSpec(
            num_scalar_prefetch=0,
            grid=(nb, nt),
            in_specs=[
                pl.BlockSpec((b_blk, t_chunk, 4 * HP), lambda b, t: (b, t, 0)),
                pl.BlockSpec((HP, 4 * HP), lambda b, t: (0, 0)),
            ],
            out_specs=[
                pl.BlockSpec((b_blk, t_chunk, HP), lambda b, t: (b, t, 0)),
                pl.BlockSpec((1, b_blk, HP), lambda b, t: (b, 0, 0)),
                pl.BlockSpec((1, b_blk, HP), lambda b, t: (b, 0, 0)),
            ],
        ),
        compiler_params=pltpu.CompilerParams(
            dimension_semantics=("parallel", "arbitrary")),  # batch ||, time serial
    )(gates_in, whh_t)

    return hs, h_n.reshape(B, HP), c_n.reshape(B, HP)


# ----------------------------------------------------------------------------
# Full forward
# ----------------------------------------------------------------------------
def shared_ipa_lm_forward(x_tokens, params, lang):
    """Forward pass of SharedIpaLM (eval mode). Returns (logits, (h_n, c_n))."""
    # TODO(synk): h_old (non-zero initial hidden state) not plumbed through; the
    # module default (zeros) is implemented, matching initHidden().
    emb = params["embedding"]                          # (V, E)
    p = params["lm_%s" % lang]
    w_ih, w_hh = p["w_ih"], p["w_hh"]                  # (4H, E), (4H, H)
    b_ih, b_hh = p["b_ih"], p["b_hh"]                  # (4H,), (4H,)
    w_out, b_out = p["w_out"], p["b_out"]              # (V, H), (V,)

    B, T = x_tokens.shape
    E = emb.shape[1]
    H = w_hh.shape[1]
    V = w_out.shape[0]
    HP = _round_up(H, 128)                             # lane-aligned gate width

    # Glue: embedding lookup (gather). Dropout is identity in eval mode.
    # TODO(synk): training-mode stochastic dropout would need pltpu.prng_* in-kernel.
    x_emb = emb[x_tokens]                              # (B, T, E)

    # Per-gate zero-padded weight layouts (gate order i, f, g, o preserved).
    wih_p = jnp.transpose(
        jnp.pad(w_ih.reshape(4, H, E), ((0, 0), (0, HP - H), (0, 0))),
        (2, 0, 1)).reshape(E, 4 * HP)                  # (E, 4*HP)
    whh_p = jnp.transpose(
        jnp.pad(w_hh.reshape(4, H, H), ((0, 0), (0, HP - H), (0, HP - H))),
        (2, 0, 1)).reshape(HP, 4 * HP)                 # (HP, 4*HP)
    b_p = jnp.pad((b_ih + b_hh).reshape(4, H),
                  ((0, 0), (0, HP - H))).reshape(4 * HP)
    wout_p = jnp.pad(w_out, ((0, 0), (0, HP - H))).T   # (HP, V)

    # Phase 1: input projection for all T*B rows at once (MXU-dense).
    gates_in = _matmul_bias(x_emb.reshape(B * T, E), wih_p, b_p)
    gates_in = gates_in.reshape(B, T, 4 * HP)

    # Phase 2: serial recurrence (only h @ W_hh^T per step).
    hs, h_n, c_n = _lstm_recurrence(gates_in, whh_p, hidden_pad=HP)

    # Phase 3: output projection over all B*T rows at once, batch-first output.
    logits = _matmul_bias(hs.reshape(B * T, HP), wout_p, b_out).reshape(B, T, V)

    return logits, (h_n[None, :, :H], c_n[None, :, :H])


# ----------------------------------------------------------------------------
# Pure-JAX reference mirroring the PyTorch forward (eval mode)
# ----------------------------------------------------------------------------
def _reference_forward(x_tokens, params, lang):
    emb = params["embedding"]
    p = params["lm_%s" % lang]
    w_ih, w_hh, b_ih, b_hh = p["w_ih"], p["w_hh"], p["b_ih"], p["b_hh"]
    w_out, b_out = p["w_out"], p["b_out"]
    H = w_hh.shape[1]
    B, T = x_tokens.shape

    x_emb = emb[x_tokens]                              # (B, T, E)

    def step(carry, x_t):
        h, c = carry
        gates = x_t @ w_ih.T + b_ih + h @ w_hh.T + b_hh
        i = jax.nn.sigmoid(gates[:, 0 * H:1 * H])
        f = jax.nn.sigmoid(gates[:, 1 * H:2 * H])
        g = jnp.tanh(gates[:, 2 * H:3 * H])
        o = jax.nn.sigmoid(gates[:, 3 * H:4 * H])
        c = f * c + i * g
        h = o * jnp.tanh(c)
        return (h, c), h

    h0 = jnp.zeros((B, H), jnp.float32)
    c0 = jnp.zeros((B, H), jnp.float32)
    (h_n, c_n), hs = jax.lax.scan(step, (h0, c0), jnp.transpose(x_emb, (1, 0, 2)))
    outputs = jnp.transpose(hs, (1, 0, 2))             # (B, T, H)
    logits = outputs @ w_out.T + b_out
    return logits, (h_n[None], c_n[None])


def init_params(key, languages, vocab_size, hidden_size, embedding_size):
    H, E, V = hidden_size, embedding_size, vocab_size
    keys = jax.random.split(key, 1 + 6 * len(languages))
    params = {"embedding": jax.random.normal(keys[0], (V, E), jnp.float32) * 0.1}
    for li, lang in enumerate(languages):
        k = keys[1 + 6 * li: 1 + 6 * (li + 1)]
        params["lm_%s" % lang] = {
            "w_ih": jax.random.normal(k[0], (4 * H, E), jnp.float32) * 0.1,
            "w_hh": jax.random.normal(k[1], (4 * H, H), jnp.float32) * 0.1,
            "b_ih": jax.random.normal(k[2], (4 * H,), jnp.float32) * 0.1,
            "b_hh": jax.random.normal(k[3], (4 * H,), jnp.float32) * 0.1,
            "w_out": jax.random.normal(k[4], (V, H), jnp.float32) * 0.1,
            "b_out": jax.random.normal(k[5], (V,), jnp.float32) * 0.1,
        }
    return params


if __name__ == "__main__":
    # Small shapes consistent with the module: batch=2, seq=8, hidden=32,
    # embedding=32, vocab=16, nlayers=1.
    B, T, H, E, V = 2, 8, 32, 32, 16
    languages = ["en", "es"]

    key = jax.random.PRNGKey(0)
    pkey, xkey = jax.random.split(key)
    params = init_params(pkey, languages, vocab_size=V, hidden_size=H,
                         embedding_size=E)
    x_tokens = jax.random.randint(xkey, (B, T), 0, V, dtype=jnp.int32)

    fwd = jax.jit(lambda x, p: shared_ipa_lm_forward(x, p, "en"))
    logits, (h_n, c_n) = fwd(x_tokens, params)
    jax.block_until_ready((logits, h_n, c_n))

    ref_logits, (ref_hn, ref_cn) = _reference_forward(x_tokens, params, "en")
    assert logits.shape == (B, T, V)
    assert h_n.shape == (1, B, H) and c_n.shape == (1, B, H)
    assert jnp.allclose(logits, ref_logits, atol=1e-4, rtol=1e-4)
    assert jnp.allclose(h_n, ref_hn, atol=1e-4, rtol=1e-4)
    assert jnp.allclose(c_n, ref_cn, atol=1e-4, rtol=1e-4)

    print("KERNEL_OK")
</pallas_src>

<mosaic_0001>
module attributes {stable_mosaic.version = 11 : i64} {
  func.func @_matmul_bias_kernel(%arg0: i32, %arg1: i32, %arg2: memref<16x32xf32, #tpu.memory_space<vmem>>, %arg3: memref<32x512xf32, #tpu.memory_space<vmem>>, %arg4: memref<1x512xf32, #tpu.memory_space<vmem>>, %arg5: memref<16x512xf32, #tpu.memory_space<vmem>>) attributes {dimension_semantics = [#tpu.dimension_semantics<parallel>, #tpu.dimension_semantics<parallel>], iteration_bounds = array<i64: 1, 1>, scalar_prefetch = 0 : i64, scratch_operands = 0 : i64, tpu.core_type = #tpu.core_type<tc>, window_params = [{transform_indices = @transform_0, window_bounds = array<i64: 16, 32>}, {transform_indices = @transform_1, window_bounds = array<i64: 32, 512>}, {transform_indices = @transform_2, window_bounds = array<i64: 1, 512>}, {transform_indices = @transform_3, window_bounds = array<i64: 16, 512>}]} {
    %c0 = arith.constant 0 : index
    %c0_0 = arith.constant 0 : index
    %0 = vector.load %arg2[%c0, %c0_0] : memref<16x32xf32, #tpu.memory_space<vmem>>, vector<16x32xf32>
    %c0_1 = arith.constant 0 : index
    %c0_2 = arith.constant 0 : index
    %1 = vector.load %arg3[%c0_1, %c0_2] : memref<32x512xf32, #tpu.memory_space<vmem>>, vector<32x512xf32>
    %cst = arith.constant dense<0.000000e+00> : vector<16x512xf32>
    %2 = tpu.matmul %0, %1, %cst {dimension_numbers = #tpu.dot_dimension_numbers<[1], [0], [0], [1], [0, 0, 1, 1], [], []>} : vector<16x32xf32>, vector<32x512xf32>, vector<16x512xf32> -> vector<16x512xf32>
    %c0_3 = arith.constant 0 : index
    %c0_4 = arith.constant 0 : index
    %3 = vector.load %arg4[%c0_3, %c0_4] : memref<1x512xf32, #tpu.memory_space<vmem>>, vector<1x512xf32>
    %4 = vector.broadcast %3 : vector<1x512xf32> to vector<16x512xf32>
    %5 = arith.addf %2, %4 : vector<16x512xf32>
    %c0_5 = arith.constant 0 : index
    %c0_6 = arith.constant 0 : index
    %6 = vector.load %arg5[%c0_5, %c0_6] : memref<16x512xf32, #tpu.memory_space<vmem>>, vector<16x512xf32>
    tpu.vector_store %arg5[%c0_5, %c0_6], %5 {strides = array<i32>} : memref<16x512xf32, #tpu.memory_space<vmem>>, vector<16x512xf32>,
    return
  }
  func.func @transform_0(%arg0: i32, %arg1: i32) -> (i32, i32) {
    %c0_i32 = arith.constant 0 : i32
    %c0_i32_0 = arith.constant 0 : i32
    return %arg0, %c0_i32 : i32, i32
  }
  func.func @transform_1(%arg0: i32, %arg1: i32) -> (i32, i32) {
    %c0_i32 = arith.constant 0 : i32
    %c0_i32_0 = arith.constant 0 : i32
    return %c0_i32, %arg1 : i32, i32
  }
  func.func @transform_2(%arg0: i32, %arg1: i32) -> (i32, i32) {
    %c0_i32 = arith.constant 0 : i32
    %c0_i32_0 = arith.constant 0 : i32
    return %c0_i32, %arg1 : i32, i32
  }
  func.func @transform_3(%arg0: i32, %arg1: i32) -> (i32, i32) {
    %c0_i32 = arith.constant 0 : i32
    return %arg0, %arg1 : i32, i32
  }
}

module attributes {stable_mosaic.version = 11 : i64} {
  func.func @_lstm_recurrent_kernel(%arg0: i32, %arg1: i32, %arg2: memref<1x8x512xf32, #tpu.memory_space<vmem>>, %arg3: memref<128x512xf32, #tpu.memory_space<vmem>>, %arg4: memref<1x8x128xf32, #tpu.memory_space<vmem>>, %arg5: memref<1x1x128xf32, #tpu.memory_space<vmem>>, %arg6: memref<1x1x128xf32, #tpu.memory_space<vmem>>) attributes {dimension_semantics = [#tpu.dimension_semantics<parallel>, #tpu.dimension_semantics<arbitrary>], iteration_bounds = array<i64: 2, 1>, scalar_prefetch = 0 : i64, scratch_operands = 0 : i64, tpu.core_type = #tpu.core_type<tc>, window_params = [{transform_indices = @transform_0, window_bounds = array<i64: 1, 8, 512>}, {pipeline_mode = #tpu.pipeline_mode<synchronous>, transform_indices = @transform_1, window_bounds = array<i64: 128, 512>}, {transform_indices = @transform_2, window_bounds = array<i64: 1, 8, 128>}, {transform_indices = @transform_3, window_bounds = array<i64: 1, 1, 128>}, {transform_indices = @transform_4, window_bounds = array<i64: 1, 1, 128>}]} {
    %c0_i32 = arith.constant 0 : i32
    %0 = arith.cmpi eq, %arg1, %c0_i32 : i32
    %1 = arith.extui %0 : i1 to i32
    %c0_i32_0 = arith.constant 0 : i32
    %2 = arith.cmpi ne, %1, %c0_i32_0 : i32
    scf.if %2 {
      %cst_86 = arith.constant 0.000000e+00 : f32
      %262 = vector.broadcast %cst_86 : f32 to vector<1x1x128xf32>
      %c0_87 = arith.constant 0 : index
      %c0_88 = arith.constant 0 : index
      %c0_89 = arith.constant 0 : index
      %263 = vector.load %arg5[%c0_87, %c0_88, %c0_89] : memref<1x1x128xf32, #tpu.memory_space<vmem>>, vector<1x1x128xf32>
      tpu.vector_store %arg5[%c0_87, %c0_88, %c0_89], %262 {strides = array<i32>} : memref<1x1x128xf32, #tpu.memory_space<vmem>>, vector<1x1x128xf32>,
      %cst_90 = arith.constant 0.000000e+00 : f32
      %264 = vector.broadcast %cst_90 : f32 to vector<1x1x128xf32>
      %c0_91 = arith.constant 0 : index
      %c0_92 = arith.constant 0 : index
      %c0_93 = arith.constant 0 : index
      %265 = vector.load %arg6[%c0_91, %c0_92, %c0_93] : memref<1x1x128xf32, #tpu.memory_space<vmem>>, vector<1x1x128xf32>
      tpu.vector_store %arg6[%c0_91, %c0_92, %c0_93], %264 {strides = array<i32>} : memref<1x1x128xf32, #tpu.memory_space<vmem>>, vector<1x1x128xf32>,
    } else {
    }
    %c0 = arith.constant 0 : index
    %c0_1 = arith.constant 0 : index
    %3 = vector.load %arg3[%c0, %c0_1] : memref<128x512xf32, #tpu.memory_space<vmem>>, vector<128x512xf32>
    %c0_2 = arith.constant 0 : index
    %c0_3 = arith.constant 0 : index
    %c0_4 = arith.constant 0 : index
    %4 = vector.load %arg5[%c0_2, %c0_3, %c0_4] : memref<1x1x128xf32, #tpu.memory_space<vmem>>, vector<1x1x128xf32>
    %5 = vector.shape_cast %4 : vector<1x1x128xf32> to vector<1x128xf32>
    %c0_5 = arith.constant 0 : index
    %c0_6 = arith.constant 0 : index
    %c0_7 = arith.constant 0 : index
    %6 = vector.load %arg6[%c0_5, %c0_6, %c0_7] : memref<1x1x128xf32, #tpu.memory_space<vmem>>, vector<1x1x128xf32>
    %7 = vector.shape_cast %6 : vector<1x1x128xf32> to vector<1x128xf32>
    %c0_8 = arith.constant 0 : index
    %c0_9 = arith.constant 0 : index
    %c0_10 = arith.constant 0 : index
    %8 = vector.load %arg2[%c0_8, %c0_9, %c0_10] : memref<1x8x512xf32, #tpu.memory_space<vmem>>, vector<1x1x512xf32>
    %9 = vector.shape_cast %8 : vector<1x1x512xf32> to vector<1x512xf32>
    %cst = arith.constant dense<0.000000e+00> : vector<1x512xf32>
    %10 = tpu.matmul %5, %3, %cst {dimension_numbers = #tpu.dot_dimension_numbers<[1], [0], [0], [1], [0, 0, 1, 1], [], []>} : vector<1x128xf32>, vector<128x512xf32>, vector<1x512xf32> -> vector<1x512xf32>
    %11 = arith.addf %9, %10 : vector<1x512xf32>
    %12 = vector.extract_strided_slice %11 {offsets = [0, 0], sizes = [1, 128], strides = [1, 1]} : vector<1x512xf32> to vector<1x128xf32>
    %13 = arith.negf %12 : vector<1x128xf32>
    %14 = math.exp %13 : vector<1x128xf32>
    %cst_11 = arith.constant 1.000000e+00 : f32
    %15 = vector.broadcast %cst_11 : f32 to vector<1x128xf32>
    %16 = arith.addf %15, %14 : vector<1x128xf32>
    %17 = arith.divf %15, %16 : vector<1x128xf32>
    %18 = vector.extract_strided_slice %11 {offsets = [0, 128], sizes = [1, 128], strides = [1, 1]} : vector<1x512xf32> to vector<1x128xf32>
    %19 = arith.negf %18 : vector<1x128xf32>
    %20 = math.exp %19 : vector<1x128xf32>
    %cst_12 = arith.constant 1.000000e+00 : f32
    %21 = vector.broadcast %cst_12 : f32 to vector<1x128xf32>
    %22 = arith.addf %21, %20 : vector<1x128xf32>
    %23 = arith.divf %21, %22 : vector<1x128xf32>
    %24 = vector.extract_strided_slice %11 {offsets = [0, 256], sizes = [1, 128], strides = [1, 1]} : vector<1x512xf32> to vector<1x128xf32>
    %25 = math.tanh %24 : vector<1x128xf32>
    %26 = vector.extract_strided_slice %11 {offsets = [0, 384], sizes = [1, 128], strides = [1, 1]} : vector<1x512xf32> to vector<1x128xf32>
    %27 = arith.negf %26 : vector<1x128xf32>
    %28 = math.exp %27 : vector<1x128xf32>
    %cst_13 = arith.constant 1.000000e+00 : f32
    %29 = vector.broadcast %cst_13 : f32 to vector<1x128xf32>
    %30 = arith.addf %29, %28 : vector<1x128xf32>
    %31 = arith.divf %29, %30 : vector<1x128xf32>
    %32 = arith.mulf %23, %7 : vector<1x128xf32>
    %33 = arith.mulf %17, %25 : vector<1x128xf32>
    %34 = arith.addf %32, %33 : vector<1x128xf32>
    %35 = math.tanh %34 : vector<1x128xf32>
    %36 = arith.mulf %31, %35 : vector<1x128xf32>
    %37 = vector.shape_cast %36 : vector<1x128xf32> to vector<1x1x128xf32>
    %c0_14 = arith.constant 0 : index
    %c0_15 = arith.constant 0 : index
    %c0_16 = arith.constant 0 : index
    %38 = vector.load %arg4[%c0_14, %c0_15, %c0_16] : memref<1x8x128xf32, #tpu.memory_space<vmem>>, vector<1x1x128xf32>
    tpu.vector_store %arg4[%c0_14, %c0_15, %c0_16], %37 {strides = array<i32>} : memref<1x8x128xf32, #tpu.memory_space<vmem>>, vector<1x1x128xf32>,
    %c0_17 = arith.constant 0 : index
    %c1 = arith.constant 1 : index
    %c0_18 = arith.constant 0 : index
    %39 = vector.load %arg2[%c0_17, %c1, %c0_18] : memref<1x8x512xf32, #tpu.memory_space<vmem>>, vector<1x1x512xf32>
    %40 = vector.shape_cast %39 : vector<1x1x512xf32> to vector<1x512xf32>
    %cst_19 = arith.constant dense<0.000000e+00> : vector<1x512xf32>
    %41 = tpu.matmul %36, %3, %cst_19 {dimension_numbers = #tpu.dot_dimension_numbers<[1], [0], [0], [1], [0, 0, 1, 1], [], []>} : vector<1x128xf32>, vector<128x512xf32>, vector<1x512xf32> -> vector<1x512xf32>
    %42 = arith.addf %40, %41 : vector<1x512xf32>
    %43 = vector.extract_strided_slice %42 {offsets = [0, 0], sizes = [1, 128], strides = [1, 1]} : vector<1x512xf32> to vector<1x128xf32>
    %44 = arith.negf %43 : vector<1x128xf32>
    %45 = math.exp %44 : vector<1x128xf32>
    %cst_20 = arith.constant 1.000000e+00 : f32
    %46 = vector.broadcast %cst_20 : f32 to vector<1x128xf32>
    %47 = arith.addf %46, %45 : vector<1x128xf32>
    %48 = arith.divf %46, %47 : vector<1x128xf32>
    %49 = vector.extract_strided_slice %42 {offsets = [0, 128], sizes = [1, 128], strides = [1, 1]} : vector<1x512xf32> to vector<1x128xf32>
    %50 = arith.negf %49 : vector<1x128xf32>
    %51 = math.exp %50 : vector<1x128xf32>
    %cst_21 = arith.constant 1.000000e+00 : f32
    %52 = vector.broadcast %cst_21 : f32 to vector<1x128xf32>
    %53 = arith.addf %52, %51 : vector<1x128xf32>
    %54 = arith.divf %52, %53 : vector<1x128xf32>
    %55 = vector.extract_strided_slice %42 {offsets = [0, 256], sizes = [1, 128], strides = [1, 1]} : vector<1x512xf32> to vector<1x128xf32>
    %56 = math.tanh %55 : vector<1x128xf32>
    %57 = vector.extract_strided_slice %42 {offsets = [0, 384], sizes = [1, 128], strides = [1, 1]} : vector<1x512xf32> to vector<1x128xf32>
    %58 = arith.negf %57 : vector<1x128xf32>
    %59 = math.exp %58 : vector<1x128xf32>
    %cst_22 = arith.constant 1.000000e+00 : f32
    %60 = vector.broadcast %cst_22 : f32 to vector<1x128xf32>
    %61 = arith.addf %60, %59 : vector<1x128xf32>
    %62 = arith.divf %60, %61 : vector<1x128xf32>
    %63 = arith.mulf %54, %34 : vector<1x128xf32>
    %64 = arith.mulf %48, %56 : vector<1x128xf32>
    %65 = arith.addf %63, %64 : vector<1x128xf32>
    %66 = math.tanh %65 : vector<1x128xf32>
    %67 = arith.mulf %62, %66 : vector<1x128xf32>
    %68 = vector.shape_cast %67 : vector<1x128xf32> to vector<1x1x128xf32>
    %c0_23 = arith.constant 0 : index
    %c1_24 = arith.constant 1 : index
    %c0_25 = arith.constant 0 : index
    %69 = vector.load %arg4[%c0_23, %c1_24, %c0_25] : memref<1x8x128xf32, #tpu.memory_space<vmem>>, vector<1x1x128xf32>
    tpu.vector_store %arg4[%c0_23, %c1_24, %c0_25], %68 {strides = array<i32>} : memref<1x8x128xf32, #tpu.memory_space<vmem>>, vector<1x1x128xf32>,
    %c0_26 = arith.constant 0 : index
    %c2 = arith.constant 2 : index
    %c0_27 = arith.constant 0 : index
    %70 = vector.load %arg2[%c0_26, %c2, %c0_27] : memref<1x8x512xf32, #tpu.memory_space<vmem>>, vector<1x1x512xf32>
    %71 = vector.shape_cast %70 : vector<1x1x512xf32> to vector<1x512xf32>
    %cst_28 = arith.constant dense<0.000000e+00> : vector<1x512xf32>
    %72 = tpu.matmul %67, %3, %cst_28 {dimension_numbers = #tpu.dot_dimension_numbers<[1], [0], [0], [1], [0, 0, 1, 1], [], []>} : vector<1x128xf32>, vector<128x512xf32>, vector<1x512xf32> -> vector<1x512xf32>
    %73 = arith.addf %71, %72 : vector<1x512xf32>
    %74 = vector.extract_strided_slice %73 {offsets = [0, 0], sizes = [1, 128], strides = [1, 1]} : vector<1x512xf32> to vector<1x128xf32>
    %75 = arith.negf %74 : vector<1x128xf32>
    %76 = math.exp %75 : vector<1x128xf32>
    %cst_29 = arith.constant 1.000000e+00 : f32
    %77 = vector.broadcast %cst_29 : f32 to vector<1x128xf32>
    %78 = arith.addf %77, %76 : vector<1x128xf32>
    %79 = arith.divf %77, %78 : vector<1x128xf32>
    %80 = vector.extract_strided_slice %73 {offsets = [0, 128], sizes = [1, 128], strides = [1, 1]} : vector<1x512xf32> to vector<1x128xf32>
    %81 = arith.negf %80 : vector<1x128xf32>
    %82 = math.exp %81 : vector<1x128xf32>
    %cst_30 = arith.constant 1.000000e+00 : f32
    %83 = vector.broadcast %cst_30 : f32 to vector<1x128xf32>
    %84 = arith.addf %83, %82 : vector<1x128xf32>
    %85 = arith.divf %83, %84 : vector<1x128xf32>
    %86 = vector.extract_strided_slice %73 {offsets = [0, 256], sizes = [1, 128], strides = [1, 1]} : vector<1x512xf32> to vector<1x128xf32>
    %87 = math.tanh %86 : vector<1x128xf32>
    %88 = vector.extract_strided_slice %73 {offsets = [0, 384], sizes = [1, 128], strides = [1, 1]} : vector<1x512xf32> to vector<1x128xf32>
    %89 = arith.negf %88 : vector<1x128xf32>
    %90 = math.exp %89 : vector<1x128xf32>
    %cst_31 = arith.constant 1.000000e+00 : f32
    %91 = vector.broadcast %cst_31 : f32 to vector<1x128xf32>
    %92 = arith.addf %91, %90 : vector<1x128xf32>
    %93 = arith.divf %91, %92 : vector<1x128xf32>
    %94 = arith.mulf %85, %65 : vector<1x128xf32>
    %95 = arith.mulf %79, %87 : vector<1x128xf32>
    %96 = arith.addf %94, %95 : vector<1x128xf32>
    %97 = math.tanh %96 : vector<1x128xf32>
    %98 = arith.mulf %93, %97 : vector<1x128xf32>
    %99 = vector.shape_cast %98 : vector<1x128xf32> to vector<1x1x128xf32>
    %c0_32 = arith.constant 0 : index
    %c2_33 = arith.constant 2 : index
    %c0_34 = arith.constant 0 : index
    %100 = vector.load %arg4[%c0_32, %c2_33, %c0_34] : memref<1x8x128xf32, #tpu.memory_space<vmem>>, vector<1x1x128xf32>
    tpu.vector_store %arg4[%c0_32, %c2_33, %c0_34], %99 {strides = array<i32>} : memref<1x8x128xf32, #tpu.memory_space<vmem>>, vector<1x1x128xf32>,
    %c0_35 = arith.constant 0 : index
    %c3 = arith.constant 3 : index
    %c0_36 = arith.constant 0 : index
    %101 = vector.load %arg2[%c0_35, %c3, %c0_36] : memref<1x8x512xf32, #tpu.memory_space<vmem>>, vector<1x1x512xf32>
    %102 = vector.shape_cast %101 : vector<1x1x512xf32> to vector<1x512xf32>
    %cst_37 = arith.constant dense<0.000000e+00> : vector<1x512xf32>
    %103 = tpu.matmul %98, %3, %cst_37 {dimension_numbers = #tpu.dot_dimension_numbers<[1], [0], [0], [1], [0, 0, 1, 1], [], []>} : vector<1x128xf32>, vector<128x512xf32>, vector<1x512xf32> -> vector<1x512xf32>
    %104 = arith.addf %102, %103 : vector<1x512xf32>
    %105 = vector.extract_strided_slice %104 {offsets = [0, 0], sizes = [1, 128], strides = [1, 1]} : vector<1x512xf32> to vector<1x128xf32>
    %106 = arith.negf %105 : vector<1x128xf32>
    %107 = math.exp %106 : vector<1x128xf32>
    %cst_38 = arith.constant 1.000000e+00 : f32
    %108 = vector.broadcast %cst_38 : f32 to vector<1x128xf32>
    %109 = arith.addf %108, %107 : vector<1x128xf32>
    %110 = arith.divf %108, %109 : vector<1x128xf32>
    %111 = vector.extract_strided_slice %104 {offsets = [0, 128], sizes = [1, 128], strides = [1, 1]} : vector<1x512xf32> to vector<1x128xf32>
    %112 = arith.negf %111 : vector<1x128xf32>
    %113 = math.exp %112 : vector<1x128xf32>
    %cst_39 = arith.constant 1.000000e+00 : f32
    %114 = vector.broadcast %cst_39 : f32 to vector<1x128xf32>
    %115 = arith.addf %114, %113 : vector<1x128xf32>
    %116 = arith.divf %114, %115 : vector<1x128xf32>
    %117 = vector.extract_strided_slice %104 {offsets = [0, 256], sizes = [1, 128], strides = [1, 1]} : vector<1x512xf32> to vector<1x128xf32>
    %118 = math.tanh %117 : vector<1x128xf32>
    %119 = vector.extract_strided_slice %104 {offsets = [0, 384], sizes = [1, 128], strides = [1, 1]} : vector<1x512xf32> to vector<1x128xf32>
    %120 = arith.negf %119 : vector<1x128xf32>
    %121 = math.exp %120 : vector<1x128xf32>
    %cst_40 = arith.constant 1.000000e+00 : f32
    %122 = vector.broadcast %cst_40 : f32 to vector<1x128xf32>
    %123 = arith.addf %122, %121 : vector<1x128xf32>
    %124 = arith.divf %122, %123 : vector<1x128xf32>
    %125 = arith.mulf %116, %96 : vector<1x128xf32>
    %126 = arith.mulf %110, %118 : vector<1x128xf32>
    %127 = arith.addf %125, %126 : vector<1x128xf32>
    %128 = math.tanh %127 : vector<1x128xf32>
    %129 = arith.mulf %124, %128 : vector<1x128xf32>
    %130 = vector.shape_cast %129 : vector<1x128xf32> to vector<1x1x128xf32>
    %c0_41 = arith.constant 0 : index
    %c3_42 = arith.constant 3 : index
    %c0_43 = arith.constant 0 : index
    %131 = vector.load %arg4[%c0_41, %c3_42, %c0_43] : memref<1x8x128xf32, #tpu.memory_space<vmem>>, vector<1x1x128xf32>
    tpu.vector_store %arg4[%c0_41, %c3_42, %c0_43], %130 {strides = array<i32>} : memref<1x8x128xf32, #tpu.memory_space<vmem>>, vector<1x1x128xf32>,
    %c0_44 = arith.constant 0 : index
    %c4 = arith.constant 4 : index
    %c0_45 = arith.constant 0 : index
    %132 = vector.load %arg2[%c0_44, %c4, %c0_45] : memref<1x8x512xf32, #tpu.memory_space<vmem>>, vector<1x1x512xf32>
    %133 = vector.shape_cast %132 : vector<1x1x512xf32> to vector<1x512xf32>
    %cst_46 = arith.constant dense<0.000000e+00> : vector<1x512xf32>
    %134 = tpu.matmul %129, %3, %cst_46 {dimension_numbers = #tpu.dot_dimension_numbers<[1], [0], [0], [1], [0, 0, 1, 1], [], []>} : vector<1x128xf32>, vector<128x512xf32>, vector<1x512xf32> -> vector<1x512xf32>
    %135 = arith.addf %133, %134 : vector<1x512xf32>
    %136 = vector.extract_strided_slice %135 {offsets = [0, 0], sizes = [1, 128], strides = [1, 1]} : vector<1x512xf32> to vector<1x128xf32>
    %137 = arith.negf %136 : vector<1x128xf32>
    %138 = math.exp %137 : vector<1x128xf32>
    %cst_47 = arith.constant 1.000000e+00 : f32
    %139 = vector.broadcast %cst_47 : f32 to vector<1x128xf32>
    %140 = arith.addf %139, %138 : vector<1x128xf32>
    %141 = arith.divf %139, %140 : vector<1x128xf32>
    %142 = vector.extract_strided_slice %135 {offsets = [0, 128], sizes = [1, 128], strides = [1, 1]} : vector<1x512xf32> to vector<1x128xf32>
    %143 = arith.negf %142 : vector<1x128xf32>
    %144 = math.exp %143 : vector<1x128xf32>
    %cst_48 = arith.constant 1.000000e+00 : f32
    %145 = vector.broadcast %cst_48 : f32 to vector<1x128xf32>
    %146 = arith.addf %145, %144 : vector<1x128xf32>
    %147 = arith.divf %145, %146 : vector<1x128xf32>
    %148 = vector.extract_strided_slice %135 {offsets = [0, 256], sizes = [1, 128], strides = [1, 1]} : vector<1x512xf32> to vector<1x128xf32>
    %149 = math.tanh %148 : vector<1x128xf32>
    %150 = vector.extract_strided_slice %135 {offsets = [0, 384], sizes = [1, 128], strides = [1, 1]} : vector<1x512xf32> to vector<1x128xf32>
    %151 = arith.negf %150 : vector<1x128xf32>
    %152 = math.exp %151 : vector<1x128xf32>
    %cst_49 = arith.constant 1.000000e+00 : f32
    %153 = vector.broadcast %cst_49 : f32 to vector<1x128xf32>
    %154 = arith.addf %153, %152 : vector<1x128xf32>
    %155 = arith.divf %153, %154 : vector<1x128xf32>
    %156 = arith.mulf %147, %127 : vector<1x128xf32>
    %157 = arith.mulf %141, %149 : vector<1x128xf32>
    %158 = arith.addf %156, %157 : vector<1x128xf32>
    %159 = math.tanh %158 : vector<1x128xf32>
    %160 = arith.mulf %155, %159 : vector<1x128xf32>
    %161 = vector.shape_cast %160 : vector<1x128xf32> to vector<1x1x128xf32>
    %c0_50 = arith.constant 0 : index
    %c4_51 = arith.constant 4 : index
    %c0_52 = arith.constant 0 : index
    %162 = vector.load %arg4[%c0_50, %c4_51, %c0_52] : memref<1x8x128xf32, #tpu.memory_space<vmem>>, vector<1x1x128xf32>
    tpu.vector_store %arg4[%c0_50, %c4_51, %c0_52], %161 {strides = array<i32>} : memref<1x8x128xf32, #tpu.memory_space<vmem>>, vector<1x1x128xf32>,
    %c0_53 = arith.constant 0 : index
    %c5 = arith.constant 5 : index
    %c0_54 = arith.constant 0 : index
    %163 = vector.load %arg2[%c0_53, %c5, %c0_54] : memref<1x8x512xf32, #tpu.memory_space<vmem>>, vector<1x1x512xf32>
    %164 = vector.shape_cast %163 : vector<1x1x512xf32> to vector<1x512xf32>
    %cst_55 = arith.constant dense<0.000000e+00> : vector<1x512xf32>
    %165 = tpu.matmul %160, %3, %cst_55 {dimension_numbers = #tpu.dot_dimension_numbers<[1], [0], [0], [1], [0, 0, 1, 1], [], []>} : vector<1x128xf32>, vector<128x512xf32>, vector<1x512xf32> -> vector<1x512xf32>
    %166 = arith.addf %164, %165 : vector<1x512xf32>
    %167 = vector.extract_strided_slice %166 {offsets = [0, 0], sizes = [1, 128], strides = [1, 1]} : vector<1x512xf32> to vector<1x128xf32>
    %168 = arith.negf %167 : vector<1x128xf32>
    %169 = math.exp %168 : vector<1x128xf32>
    %cst_56 = arith.constant 1.000000e+00 : f32
    %170 = vector.broadcast %cst_56 : f32 to vector<1x128xf32>
    %171 = arith.addf %170, %169 : vector<1x128xf32>
    %172 = arith.divf %170, %171 : vector<1x128xf32>
    %173 = vector.extract_strided_slice %166 {offsets = [0, 128], sizes = [1, 128], strides = [1, 1]} : vector<1x512xf32> to vector<1x128xf32>
    %174 = arith.negf %173 : vector<1x128xf32>
    %175 = math.exp %174 : vector<1x128xf32>
    %cst_57 = arith.constant 1.000000e+00 : f32
    %176 = vector.broadcast %cst_57 : f32 to vector<1x128xf32>
    %177 = arith.addf %176, %175 : vector<1x128xf32>
    %178 = arith.divf %176, %177 : vector<1x128xf32>
    %179 = vector.extract_strided_slice %166 {offsets = [0, 256], sizes = [1, 128], strides = [1, 1]} : vector<1x512xf32> to vector<1x128xf32>
    %180 = math.tanh %179 : vector<1x128xf32>
    %181 = vector.extract_strided_slice %166 {offsets = [0, 384], sizes = [1, 128], strides = [1, 1]} : vector<1x512xf32> to vector<1x128xf32>
    %182 = arith.negf %181 : vector<1x128xf32>
    %183 = math.exp %182 : vector<1x128xf32>
    %cst_58 = arith.constant 1.000000e+00 : f32
    %184 = vector.broadcast %cst_58 : f32 to vector<1x128xf32>
    %185 = arith.addf %184, %183 : vector<1x128xf32>
    %186 = arith.divf %184, %185 : vector<1x128xf32>
    %187 = arith.mulf %178, %158 : vector<1x128xf32>
    %188 = arith.mulf %172, %180 : vector<1x128xf32>
    %189 = arith.addf %187, %188 : vector<1x128xf32>
    %190 = math.tanh %189 : vector<1x128xf32>
    %191 = arith.mulf %186, %190 : vector<1x128xf32>
    %192 = vector.shape_cast %191 : vector<1x128xf32> to vector<1x1x128xf32>
    %c0_59 = arith.constant 0 : index
    %c5_60 = arith.constant 5 : index
    %c0_61 = arith.constant 0 : index
    %193 = vector.load %arg4[%c0_59, %c5_60, %c0_61] : memref<1x8x128xf32, #tpu.memory_space<vmem>>, vector<1x1x128xf32>
    tpu.vector_store %arg4[%c0_59, %c5_60, %c0_61], %192 {strides = array<i32>} : memref<1x8x128xf32, #tpu.memory_space<vmem>>, vector<1x1x128xf32>,
    %c0_62 = arith.constant 0 : index
    %c6 = arith.constant 6 : index
    %c0_63 = arith.constant 0 : index
    %194 = vector.load %arg2[%c0_62, %c6, %c0_63] : memref<1x8x512xf32, #tpu.memory_space<vmem>>, vector<1x1x512xf32>
    %195 = vector.shape_cast %194 : vector<1x1x512xf32> to vector<1x512xf32>
    %cst_64 = arith.constant dense<0.000000e+00> : vector<1x512xf32>
    %196 = tpu.matmul %191, %3, %cst_64 {dimension_numbers = #tpu.dot_dimension_numbers<[1], [0], [0], [1], [0, 0, 1, 1], [], []>} : vector<1x128xf32>, vector<128x512xf32>, vector<1x512xf32> -> vector<1x512xf32>
    %197 = arith.addf %195, %196 : vector<1x512xf32>
    %198 = vector.extract_strided_slice %197 {offsets = [0, 0], sizes = [1, 128], strides = [1, 1]} : vector<1x512xf32> to vector<1x128xf32>
    %199 = arith.negf %198 : vector<1x128xf32>
    %200 = math.exp %199 : vector<1x128xf32>
    %cst_65 = arith.constant 1.000000e+00 : f32
    %201 = vector.broadcast %cst_65 : f32 to vector<1x128xf32>
    %202 = arith.addf %201, %200 : vector<1x128xf32>
    %203 = arith.divf %201, %202 : vector<1x128xf32>
    %204 = vector.extract_strided_slice %197 {offsets = [0, 128], sizes = [1, 128], strides = [1, 1]} : vector<1x512xf32> to vector<1x128xf32>
    %205 = arith.negf %204 : vector<1x128xf32>
    %206 = math.exp %205 : vector<1x128xf32>
    %cst_66 = arith.constant 1.000000e+00 : f32
    %207 = vector.broadcast %cst_66 : f32 to vector<1x128xf32>
    %208 = arith.addf %207, %206 : vector<1x128xf32>
    %209 = arith.divf %207, %208 : vector<1x128xf32>
    %210 = vector.extract_strided_slice %197 {offsets = [0, 256], sizes = [1, 128], strides = [1, 1]} : vector<1x512xf32> to vector<1x128xf32>
    %211 = math.tanh %210 : vector<1x128xf32>
    %212 = vector.extract_strided_slice %197 {offsets = [0, 384], sizes = [1, 128], strides = [1, 1]} : vector<1x512xf32> to vector<1x128xf32>
    %213 = arith.negf %212 : vector<1x128xf32>
    %214 = math.exp %213 : vector<1x128xf32>
    %cst_67 = arith.constant 1.000000e+00 : f32
    %215 = vector.broadcast %cst_67 : f32 to vector<1x128xf32>
    %216 = arith.addf %215, %214 : vector<1x128xf32>
    %217 = arith.divf %215, %216 : vector<1x128xf32>
    %218 = arith.mulf %209, %189 : vector<1x128xf32>
    %219 = arith.mulf %203, %211 : vector<1x128xf32>
    %220 = arith.addf %218, %219 : vector<1x128xf32>
    %221 = math.tanh %220 : vector<1x128xf32>
    %222 = arith.mulf %217, %221 : vector<1x128xf32>
    %223 = vector.shape_cast %222 : vector<1x128xf32> to vector<1x1x128xf32>
    %c0_68 = arith.constant 0 : index
    %c6_69 = arith.constant 6 : index
    %c0_70 = arith.constant 0 : index
    %224 = vector.load %arg4[%c0_68, %c6_69, %c0_70] : memref<1x8x128xf32, #tpu.memory_space<vmem>>, vector<1x1x128xf32>
    tpu.vector_store %arg4[%c0_68, %c6_69, %c0_70], %223 {strides = array<i32>} : memref<1x8x128xf32, #tpu.memory_space<vmem>>, vector<1x1x128xf32>,
    %c0_71 = arith.constant 0 : index
    %c7 = arith.constant 7 : index
    %c0_72 = arith.constant 0 : index
    %225 = vector.load %arg2[%c0_71, %c7, %c0_72] : memref<1x8x512xf32, #tpu.memory_space<vmem>>, vector<1x1x512xf32>
    %226 = vector.shape_cast %225 : vector<1x1x512xf32> to vector<1x512xf32>
    %cst_73 = arith.constant dense<0.000000e+00> : vector<1x512xf32>
    %227 = tpu.matmul %222, %3, %cst_73 {dimension_numbers = #tpu.dot_dimension_numbers<[1], [0], [0], [1], [0, 0, 1, 1], [], []>} : vector<1x128xf32>, vector<128x512xf32>, vector<1x512xf32> -> vector<1x512xf32>
    %228 = arith.addf %226, %227 : vector<1x512xf32>
    %229 = vector.extract_strided_slice %228 {offsets = [0, 0], sizes = [1, 128], strides = [1, 1]} : vector<1x512xf32> to vector<1x128xf32>
    %230 = arith.negf %229 : vector<1x128xf32>
    %231 = math.exp %230 : vector<1x128xf32>
    %cst_74 = arith.constant 1.000000e+00 : f32
    %232 = vector.broadcast %cst_74 : f32 to vector<1x128xf32>
    %233 = arith.addf %232, %231 : vector<1x128xf32>
    %234 = arith.divf %232, %233 : vector<1x128xf32>
    %235 = vector.extract_strided_slice %228 {offsets = [0, 128], sizes = [1, 128], strides = [1, 1]} : vector<1x512xf32> to vector<1x128xf32>
    %236 = arith.negf %235 : vector<1x128xf32>
    %237 = math.exp %236 : vector<1x128xf32>
    %cst_75 = arith.constant 1.000000e+00 : f32
    %238 = vector.broadcast %cst_75 : f32 to vector<1x128xf32>
    %239 = arith.addf %238, %237 : vector<1x128xf32>
    %240 = arith.divf %238, %239 : vector<1x128xf32>
    %241 = vector.extract_strided_slice %228 {offsets = [0, 256], sizes = [1, 128], strides = [1, 1]} : vector<1x512xf32> to vector<1x128xf32>
    %242 = math.tanh %241 : vector<1x128xf32>
    %243 = vector.extract_strided_slice %228 {offsets = [0, 384], sizes = [1, 128], strides = [1, 1]} : vector<1x512xf32> to vector<1x128xf32>
    %244 = arith.negf %243 : vector<1x128xf32>
    %245 = math.exp %244 : vector<1x128xf32>
    %cst_76 = arith.constant 1.000000e+00 : f32
    %246 = vector.broadcast %cst_76 : f32 to vector<1x128xf32>
    %247 = arith.addf %246, %245 : vector<1x128xf32>
    %248 = arith.divf %246, %247 : vector<1x128xf32>
    %249 = arith.mulf %240, %220 : vector<1x128xf32>
    %250 = arith.mulf %234, %242 : vector<1x128xf32>
    %251 = arith.addf %249, %250 : vector<1x128xf32>
    %252 = math.tanh %251 : vector<1x128xf32>
    %253 = arith.mulf %248, %252 : vector<1x128xf32>
    %254 = vector.shape_cast %253 : vector<1x128xf32> to vector<1x1x128xf32>
    %c0_77 = arith.constant 0 : index
    %c7_78 = arith.constant 7 : index
    %c0_79 = arith.constant 0 : index
    %255 = vector.load %arg4[%c0_77, %c7_78, %c0_79] : memref<1x8x128xf32, #tpu.memory_space<vmem>>, vector<1x1x128xf32>
    tpu.vector_store %arg4[%c0_77, %c7_78, %c0_79], %254 {strides = array<i32>} : memref<1x8x128xf32, #tpu.memory_space<vmem>>, vector<1x1x128xf32>,
    %c0_80 = arith.constant 0 : index
    %c0_81 = arith.constant 0 : index
    %c0_82 = arith.constant 0 : index
    %256 = vector.load %arg5[%c0_80, %c0_81, %c0_82] : memref<1x1x128xf32, #tpu.memory_space<vmem>>, vector<1x1x128xf32>
    %257 = vector.shape_cast %256 : vector<1x1x128xf32> to vector<1x128xf32>
    %258 = vector.shape_cast %253 : vector<1x128xf32> to vector<1x1x128xf32>
    tpu.vector_store %arg5[%c0_80, %c0_81, %c0_82], %258 {strides = array<i32>} : memref<1x1x128xf32, #tpu.memory_space<vmem>>, vector<1x1x128xf32>,
    %c0_83 = arith.constant 0 : index
    %c0_84 = arith.constant 0 : index
    %c0_85 = arith.constant 0 : index
    %259 = vector.load %arg6[%c0_83, %c0_84, %c0_85] : memref<1x1x128xf32, #tpu.memory_space<vmem>>, vector<1x1x128xf32>
    %260 = vector.shape_cast %259 : vector<1x1x128xf32> to vector<1x128xf32>
    %261 = vector.shape_cast %251 : vector<1x128xf32> to vector<1x1x128xf32>
    tpu.vector_store %arg6[%c0_83, %c0_84, %c0_85], %261 {strides = array<i32>} : memref<1x1x128xf32, #tpu.memory_space<vmem>>, vector<1x1x128xf32>,
    return
  }
  func.func @transform_0(%arg0: i32, %arg1: i32) -> (i32, i32, i32) {
    %c0_i32 = arith.constant 0 : i32
    %c0_i32_0 = arith.constant 0 : i32
    return %arg0, %arg1, %c0_i32 : i32, i32, i32
  }
  func.func @transform_1(%arg0: i32, %arg1: i32) -> (i32, i32) {
    %c0_i32 = arith.constant 0 : i32
    %c0_i32_0 = arith.constant 0 : i32
    %c0_i32_1 = arith.constant 0 : i32
    return %c0_i32, %c0_i32_0 : i32, i32
  }
  func.func @transform_2(%arg0: i32, %arg1: i32) -> (i32, i32, i32) {
    %c0_i32 = arith.constant 0 : i32
    %c0_i32_0 = arith.constant 0 : i32
    return %arg0, %arg1, %c0_i32 : i32, i32, i32
  }
  func.func @transform_3(%arg0: i32, %arg1: i32) -> (i32, i32, i32) {
    %c0_i32 = arith.constant 0 : i32
    %c0_i32_0 = arith.constant 0 : i32
    %c0_i32_1 = arith.constant 0 : i32
    return %arg0, %c0_i32, %c0_i32_0 : i32, i32, i32
  }
  func.func @transform_4(%arg0: i32, %arg1: i32) -> (i32, i32, i32) {
    %c0_i32 = arith.constant 0 : i32
    %c0_i32_0 = arith.constant 0 : i32
    %c0_i32_1 = arith.constant 0 : i32
    return %arg0, %c0_i32, %c0_i32_0 : i32, i32, i32
  }
}

module attributes {stable_mosaic.version = 11 : i64} {
  func.func @_matmul_bias_kernel(%arg0: i32, %arg1: i32, %arg2: memref<16x128xf32, #tpu.memory_space<vmem>>, %arg3: memref<128x128xf32, #tpu.memory_space<vmem>>, %arg4: memref<1x128xf32, #tpu.memory_space<vmem>>, %arg5: memref<16x128xf32, #tpu.memory_space<vmem>>) attributes {dimension_semantics = [#tpu.dimension_semantics<parallel>, #tpu.dimension_semantics<parallel>], iteration_bounds = array<i64: 1, 1>, scalar_prefetch = 0 : i64, scratch_operands = 0 : i64, tpu.core_type = #tpu.core_type<tc>, window_params = [{transform_indices = @transform_0, window_bounds = array<i64: 16, 128>}, {transform_indices = @transform_1, window_bounds = array<i64: 128, 128>}, {transform_indices = @transform_2, window_bounds = array<i64: 1, 128>}, {transform_indices = @transform_3, window_bounds = array<i64: 16, 128>}]} {
    %c0 = arith.constant 0 : index
    %c0_0 = arith.constant 0 : index
    %0 = vector.load %arg2[%c0, %c0_0] : memref<16x128xf32, #tpu.memory_space<vmem>>, vector<16x128xf32>
    %c0_1 = arith.constant 0 : index
    %c0_2 = arith.constant 0 : index
    %1 = vector.load %arg3[%c0_1, %c0_2] : memref<128x128xf32, #tpu.memory_space<vmem>>, vector<128x128xf32>
    %cst = arith.constant dense<0.000000e+00> : vector<16x128xf32>
    %2 = tpu.matmul %0, %1, %cst {dimension_numbers = #tpu.dot_dimension_numbers<[1], [0], [0], [1], [0, 0, 1, 1], [], []>} : vector<16x128xf32>, vector<128x128xf32>, vector<16x128xf32> -> vector<16x128xf32>
    %c0_3 = arith.constant 0 : index
    %c0_4 = arith.constant 0 : index
    %3 = vector.load %arg4[%c0_3, %c0_4] : memref<1x128xf32, #tpu.memory_space<vmem>>, vector<1x128xf32>
    %4 = vector.broadcast %3 : vector<1x128xf32> to vector<16x128xf32>
    %5 = arith.addf %2, %4 : vector<16x128xf32>
    %c0_5 = arith.constant 0 : index
    %c0_6 = arith.constant 0 : index
    %6 = vector.load %arg5[%c0_5, %c0_6] : memref<16x128xf32, #tpu.memory_space<vmem>>, vector<16x128xf32>
    tpu.vector_store %arg5[%c0_5, %c0_6], %5 {strides = array<i32>} : memref<16x128xf32, #tpu.memory_space<vmem>>, vector<16x128xf32>,
    return
  }
  func.func @transform_0(%arg0: i32, %arg1: i32) -> (i32, i32) {
    %c0_i32 = arith.constant 0 : i32
    %c0_i32_0 = arith.constant 0 : i32
    return %arg0, %c0_i32 : i32, i32
  }
  func.func @transform_1(%arg0: i32, %arg1: i32) -> (i32, i32) {
    %c0_i32 = arith.constant 0 : i32
    %c0_i32_0 = arith.constant 0 : i32
    return %c0_i32, %arg1 : i32, i32
  }
  func.func @transform_2(%arg0: i32, %arg1: i32) -> (i32, i32) {
    %c0_i32 = arith.constant 0 : i32
    %c0_i32_0 = arith.constant 0 : i32
    return %c0_i32, %arg1 : i32, i32
  }
  func.func @transform_3(%arg0: i32, %arg1: i32) -> (i32, i32) {
    %c0_i32 = arith.constant 0 : i32
    return %arg0, %arg1 : i32, i32
  }
}

</mosaic_0001>

<llo_original>
// kernel: _lambda_.3
$region0: #{_lambda_.3}
  #allocation0 [shape = 'u32[]', space=smem, size = 0x4, offset = 0x4, fixed_abs, tag = 'smem constant byte address 0x4 - core index']
  #allocation1 [shape = 'u32[144,128]{1,0:T(1,128)}', space=vmem, size = 0x12000, scoped, tag = 'internal scratch']
  %s0 = inlined_call_operand.vmem [shape: f32[16,32], index: 0, kind: input, shape index: {}]
  %s1 = inlined_call_operand.vmem [shape: f32[32,512], index: 1, kind: input, shape index: {}]
  %s2 = inlined_call_operand.vmem [shape: f32[1,512], index: 2, kind: input, shape index: {}]
  %s3 = inlined_call_operand.vmem [shape: f32[16,512], index: 3, kind: output, shape index: {}]
  %s4 = sld [smem:[#allocation0]]
  $region22: #{_lambda_.3} parent=0
    _
  %s6 = ssub.s32 1, %s4
  %s7 = scalar_select 0, %s6, %s4
  // Predicated region
  $region2: #{_lambda_.3} parent=0 // pred_check
    _
  $region3: #{_lambda_.3} parent=0 // pred_check_branch
    %9 = sbr.rel (0) target = $region5
  $region4: #{_lambda_.3} parent=0 // pred_region
    _
  $region5: #{_lambda_.3} parent=0 // pred_fallthru
    _
  // Predicated region
  $region6: #{_lambda_.3} parent=0 // pred_check
    _
  $region7: #{_lambda_.3} parent=0 // pred_check_branch
    %11 = sbr.rel (0) target = $region9
  $region8: #{_lambda_.3} parent=0 // pred_region
    _
  $region9: #{_lambda_.3} parent=0 // pred_fallthru
    _
  // Predicated region
  $region10: #{_lambda_.3} parent=0 // pred_check
    _
  $region11: #{_lambda_.3} parent=0 // pred_check_branch
    %13 = sbr.rel (0) target = $region13
  $region12: #{_lambda_.3} parent=0 // pred_region
    _
  $region13: #{_lambda_.3} parent=0 // pred_fallthru
    _
  %v14 = vld [vmem:[%s0] sm:$0xff]
  %v15 = vld [vmem:[%s0 + $0x8] sm:$0xff]
  %v16 = vld [vmem:[%s1] sm:$0xff]
  %v17 = vld [vmem:[%s1 + $0x8] sm:$0xff]
  %v18 = vld [vmem:[%s1 + $0x10] sm:$0xff]
  %v19 = vld [vmem:[%s1 + $0x18] sm:$0xff]
  %v20 = vld [vmem:[%s1 + $0x20] sm:$0xff]
  %v21 = vld [vmem:[%s1 + $0x28] sm:$0xff]
  %v22 = vld [vmem:[%s1 + $0x30] sm:$0xff]
  %v23 = vld [vmem:[%s1 + $0x38] sm:$0xff]
  %v24 = vld [vmem:[%s1 + $0x40] sm:$0xff]
  %v25 = vld [vmem:[%s1 + $0x48] sm:$0xff]
  %v26 = vld [vmem:[%s1 + $0x50] sm:$0xff]
  %v27 = vld [vmem:[%s1 + $0x58] sm:$0xff]
  %v28 = vld [vmem:[%s1 + $0x60] sm:$0xff]
  %v29 = vld [vmem:[%s1 + $0x68] sm:$0xff]
  %v30 = vld [vmem:[%s1 + $0x70] sm:$0xff]
  %v31 = vld [vmem:[%s1 + $0x78] sm:$0xff]
  %v32 = vld [vmem:[%s2] sm:$0xf]
  %v34 = vlaneseq
  %v35 = vshrl.u32 %v34, 7
  %v36 = vsub.s32 0, %v35
  %v37 = vrot.slane %v32, %v36
  %v38 = vlaneseq
  %v39 = vshrl.u32 %v38, 7
  %v40 = vsub.s32 1, %v39
  %v41 = vrot.slane %v32, %v40
  %v42 = vlaneseq
  %v43 = vshrl.u32 %v42, 7
  %v44 = vsub.s32 2, %v43
  %v45 = vrot.slane %v32, %v44
  %v46 = vlaneseq
  %v47 = vshrl.u32 %v46, 7
  %v48 = vsub.s32 3, %v47
  %v49 = vrot.slane %v32, %v48
  %vm54 = vcmask 261120
  %v56 = vsel %vm54, %v14, 0
  %v59 = vsel %vm54, %v15, 0
  %61 = vmatprep.subr.mxu0 %v17
  %62 = vmatpush1.msra.mxu0 %v16
  %63 = vmatprep.subr.mxu0 %v21
  %64 = vmatpush1.msra.mxu0 %v20
  %65 = vmatprep.subr.mxu0 %v25
  %66 = vmatpush1.msra.mxu0 %v24
  %67 = vmatprep.subr.mxu0 %v29
  %68 = vmatpush1.msra.mxu0 %v28
  %69 = vmatprep.subr.mxu0 0.0
  %70 = vmatpush1.msra.mxu0 0.0
  %71 = vmatprep.subr.mxu0 0.0
  %72 = vmatpush1.msra.mxu0 0.0
  %73 = vmatprep.subr.mxu0 0.0
  %74 = vmatpush1.msra.mxu0 0.0
  %75 = vmatprep.subr.mxu0 0.0
  %76 = vmatpush1.msra.mxu0 0.0
  %77 = vmatprep.subr.mxu0 0.0
  %78 = vmatpush1.msra.mxu0 0.0
  %79 = vmatprep.subr.mxu0 0.0
  %80 = vmatpush1.msra.mxu0 0.0
  %81 = vmatprep.subr.mxu0 0.0
  %82 = vmatpush1.msra.mxu0 0.0
  %83 = vmatprep.subr.mxu0 0.0
  %84 = vmatpush1.msra.mxu0 0.0
  %85 = vmatprep.subr.mxu0 0.0
  %86 = vmatpush1.msra.mxu0 0.0
  %87 = vmatprep.subr.mxu0 0.0
  %88 = vmatpush1.msra.mxu0 0.0
  %89 = vmatprep.subr.mxu0 0.0
  %90 = vmatpush1.msra.mxu0 0.0
  %91 = vmatprep.subr.mxu0 0.0
  %92 = vmatpush1.msra.mxu0 0.0
  %93 = vmatprep.subr.mxu0 0.0
  %94 = vmatpush1.msra.mxu0 0.0
  %95 = vmatprep.subr.mxu0 0.0
  %96 = vmatpush1.msra.mxu0 0.0
  %97 = vmatprep.subr.mxu0 0.0
  %98 = vmatpush1.msra.mxu0 0.0
  %99 = vmatprep.subr.mxu0 0.0
  %100 = vmatpush1.msra.mxu0 0.0
  %101 = vmatprep.subr.mxu0 0.0
  %102 = vmatpush1.msra.mxu0 0.0
  %103 = vmatprep.subr.mxu0 0.0
  %104 = vmatpush1.msra.mxu0 0.0
  %105 = vmatprep.subr.mxu0 0.0
  %106 = vmatpush1.msra.mxu0 0.0
  %107 = vmatprep.subr.mxu0 0.0
  %108 = vmatpush1.msra.mxu0 0.0
  %109 = vmatprep.subr.mxu0 0.0
  %110 = vmatpush1.msra.mxu0 0.0
  %111 = vmatprep.subr.mxu0 0.0
  %112 = vmatpush1.msra.mxu0 0.0
  %113 = vmatprep.subr.mxu0 0.0
  %114 = vmatpush1.msra.mxu0 0.0
  %115 = vmatprep.subr.mxu0 0.0
  %116 = vmatpush1.msra.mxu0 0.0
  %117 = vmatprep.subr.mxu0 0.0
  %118 = vmatpush1.msra.mxu0 0.0
  %119 = vmatprep.subr.mxu0 0.0
  %120 = vmatpush1.msra.mxu0 0.0
  %121 = vmatprep.subr.mxu0 0.0
  %122 = vmatpush1.msra.mxu0 0.0
  %123 = vmatprep.subr.mxu0 0.0
  %124 = vmatpush1.msra.mxu0 0.0
  %125 = vmatprep.mubr.f32.mxu0 0.0
  %126 = vmatmul.mubr.f32.gmra.mrb[0].mxu0 %v56
  %v127 = vpop.f32.mrb[0].mxu0
  %v128 = vadd.f32 %v37, %v127
  %v129 = vpop.f32.mrb[0].mxu0
  %v130 = vadd.f32 %v41, %v129
  %131 = vmatprep.mubr.f32.mxu0 0.0
  %132 = vmatmul.mubr.f32.gmra.mrb[0].mxu0 %v59
  %v133 = vpop.f32.mrb[0].mxu0
  %v134 = vadd.f32 %v37, %v133
  %v135 = vpop.f32.mrb[0].mxu0
  %v136 = vadd.f32 %v41, %v135
  %137 = vdwg.mxu0
  %138 = vmatprep.subr.mxu0 %v19
  %139 = vmatpush1.msra.mxu0 %v18
  %140 = vmatprep.subr.mxu0 %v23
  %141 = vmatpush1.msra.mxu0 %v22
  %142 = vmatprep.subr.mxu0 %v27
  %143 = vmatpush1.msra.mxu0 %v26
  %144 = vmatprep.subr.mxu0 %v31
  %145 = vmatpush1.msra.mxu0 %v30
  %146 = vmatprep.subr.mxu0 0.0
  %147 = vmatpush1.msra.mxu0 0.0
  %148 = vmatprep.subr.mxu0 0.0
  %149 = vmatpush1.msra.mxu0 0.0
  %150 = vmatprep.subr.mxu0 0.0
  %151 = vmatpush1.msra.mxu0 0.0
  %152 = vmatprep.subr.mxu0 0.0
  %153 = vmatpush1.msra.mxu0 0.0
  %154 = vmatprep.subr.mxu0 0.0
  %155 = vmatpush1.msra.mxu0 0.0
  %156 = vmatprep.subr.mxu0 0.0
  %157 = vmatpush1.msra.mxu0 0.0
  %158 = vmatprep.subr.mxu0 0.0
  %159 = vmatpush1.msra.mxu0 0.0
  %160 = vmatprep.subr.mxu0 0.0
  %161 = vmatpush1.msra.mxu0 0.0
  %162 = vmatprep.subr.mxu0 0.0
  %163 = vmatpush1.msra.mxu0 0.0
  %164 = vmatprep.subr.mxu0 0.0
  %165 = vmatpush1.msra.mxu0 0.0
  %166 = vmatprep.subr.mxu0 0.0
  %167 = vmatpush1.msra.mxu0 0.0
  %168 = vmatprep.subr.mxu0 0.0
  %169 = vmatpush1.msra.mxu0 0.0
  %170 = vmatprep.subr.mxu0 0.0
  %171 = vmatpush1.msra.mxu0 0.0
  %172 = vmatprep.subr.mxu0 0.0
  %173 = vmatpush1.msra.mxu0 0.0
  %174 = vmatprep.subr.mxu0 0.0
  %175 = vmatpush1.msra.mxu0 0.0
  %176 = vmatprep.subr.mxu0 0.0
  %177 = vmatpush1.msra.mxu0 0.0
  %178 = vmatprep.subr.mxu0 0.0
  %179 = vmatpush1.msra.mxu0 0.0
  %180 = vmatprep.subr.mxu0 0.0
  %181 = vmatpush1.msra.mxu0 0.0
  %182 = vmatprep.subr.mxu0 0.0
  %183 = vmatpush1.msra.mxu0 0.0
  %184 = vmatprep.subr.mxu0 0.0
  %185 = vmatpush1.msra.mxu0 0.0
  %186 = vmatprep.subr.mxu0 0.0
  %187 = vmatpush1.msra.mxu0 0.0
  %188 = vmatprep.subr.mxu0 0.0
  %189 = vmatpush1.msra.mxu0 0.0
  %190 = vmatprep.subr.mxu0 0.0
  %191 = vmatpush1.msra.mxu0 0.0
  %192 = vmatprep.subr.mxu0 0.0
  %193 = vmatpush1.msra.mxu0 0.0
  %194 = vmatprep.subr.mxu0 0.0
  %195 = vmatpush1.msra.mxu0 0.0
  %196 = vmatprep.subr.mxu0 0.0
  %197 = vmatpush1.msra.mxu0 0.0
  %198 = vmatprep.subr.mxu0 0.0
  %199 = vmatpush1.msra.mxu0 0.0
  %200 = vmatprep.subr.mxu0 0.0
  %201 = vmatpush1.msra.mxu0 0.0
  %202 = vmatprep.mubr.f32.mxu0 0.0
  %203 = vmatmul.mubr.f32.gmra.mrb[0].mxu0 %v56
  %v204 = vpop.f32.mrb[0].mxu0
  %v205 = vadd.f32 %v45, %v204
  %v206 = vpop.f32.mrb[0].mxu0
  %v207 = vadd.f32 %v49, %v206
  %208 = vmatprep.mubr.f32.mxu0 0.0
  %209 = vmatmul.mubr.f32.gmra.mrb[0].mxu0 %v59
  %v210 = vpop.f32.mrb[0].mxu0
  %v211 = vadd.f32 %v45, %v210
  %v212 = vpop.f32.mrb[0].mxu0
  %v213 = vadd.f32 %v49, %v212
  %214 = vdwg.mxu0
  %215 = vst [vmem:[%s3] sm:$0xff] %v128
  %216 = vst [vmem:[%s3 + $0x8] sm:$0xff] %v130
  %217 = vst [vmem:[%s3 + $0x10] sm:$0xff] %v205
  %218 = vst [vmem:[%s3 + $0x18] sm:$0xff] %v207
  %219 = vst [vmem:[%s3 + $0x20] sm:$0xff] %v134
  %220 = vst [vmem:[%s3 + $0x28] sm:$0xff] %v136
  %221 = vst [vmem:[%s3 + $0x30] sm:$0xff] %v211
  %222 = vst [vmem:[%s3 + $0x38] sm:$0xff] %v213
  // Predicated region
  $region14: #{_lambda_.3} parent=0 // pred_check
    _
  $region15: #{_lambda_.3} parent=0 // pred_check_branch
    %224 = sbr.rel (0) target = $region17
  $region16: #{_lambda_.3} parent=0 // pred_region
    _
  $region17: #{_lambda_.3} parent=0 // pred_fallthru
    _
  // Predicated region
  $region18: #{_lambda_.3} parent=0 // pred_check
    _
  $region19: #{_lambda_.3} parent=0 // pred_check_branch
    %226 = sbr.rel (0) target = $region21
  $region20: #{_lambda_.3} parent=0 // pred_region
    _
  $region21: #{_lambda_.3} parent=0 // pred_fallthru
    _

// kernel: _lambda_.5
$region0: #{_lambda_.5}
  #allocation0 [shape = 'u32[]', space=smem, size = 0x4, offset = 0x4, fixed_abs, tag = 'smem constant byte address 0x4 - core index']
  #allocation1 [shape = 'u32[144,128]{1,0:T(1,128)}', space=vmem, size = 0x12000, scoped, tag = 'internal scratch']
  %s0 = inlined_call_operand.vmem [shape: f32[16,128], index: 0, kind: input, shape index: {}]
  %s1 = inlined_call_operand.vmem [shape: f32[128,128], index: 1, kind: input, shape index: {}]
  %s2 = inlined_call_operand.vmem [shape: f32[1,128], index: 2, kind: input, shape index: {}]
  %s3 = inlined_call_operand.vmem [shape: f32[16,128], index: 3, kind: output, shape index: {}]
  %s4 = sld [smem:[#allocation0]]
  $region22: #{_lambda_.5} parent=0
    _
  %s6 = ssub.s32 1, %s4
  %s7 = scalar_select 0, %s6, %s4
  // Predicated region
  $region2: #{_lambda_.5} parent=0 // pred_check
    _
  $region3: #{_lambda_.5} parent=0 // pred_check_branch
    %9 = sbr.rel (0) target = $region5
  $region4: #{_lambda_.5} parent=0 // pred_region
    _
  $region5: #{_lambda_.5} parent=0 // pred_fallthru
    _
  // Predicated region
  $region6: #{_lambda_.5} parent=0 // pred_check
    _
  $region7: #{_lambda_.5} parent=0 // pred_check_branch
    %11 = sbr.rel (0) target = $region9
  $region8: #{_lambda_.5} parent=0 // pred_region
    _
  $region9: #{_lambda_.5} parent=0 // pred_fallthru
    _
  // Predicated region
  $region10: #{_lambda_.5} parent=0 // pred_check
    _
  $region11: #{_lambda_.5} parent=0 // pred_check_branch
    %13 = sbr.rel (0) target = $region13
  $region12: #{_lambda_.5} parent=0 // pred_region
    _
  $region13: #{_lambda_.5} parent=0 // pred_fallthru
    _
  %v14 = vld [vmem:[%s0] sm:$0xff]
  %v15 = vld [vmem:[%s0 + $0x8] sm:$0xff]
  %v16 = vld [vmem:[%s1] sm:$0xff]
  %v17 = vld [vmem:[%s1 + $0x8] sm:$0xff]
  %v18 = vld [vmem:[%s1 + $0x10] sm:$0xff]
  %v19 = vld [vmem:[%s1 + $0x18] sm:$0xff]
  %v20 = vld [vmem:[%s1 + $0x20] sm:$0xff]
  %v21 = vld [vmem:[%s1 + $0x28] sm:$0xff]
  %v22 = vld [vmem:[%s1 + $0x30] sm:$0xff]
  %v23 = vld [vmem:[%s1 + $0x38] sm:$0xff]
  %v24 = vld [vmem:[%s1 + $0x40] sm:$0xff]
  %v25 = vld [vmem:[%s1 + $0x48] sm:$0xff]
  %v26 = vld [vmem:[%s1 + $0x50] sm:$0xff]
  %v27 = vld [vmem:[%s1 + $0x58] sm:$0xff]
  %v28 = vld [vmem:[%s1 + $0x60] sm:$0xff]
  %v29 = vld [vmem:[%s1 + $0x68] sm:$0xff]
  %v30 = vld [vmem:[%s1 + $0x70] sm:$0xff]
  %v31 = vld [vmem:[%s1 + $0x78] sm:$0xff]
  %v32 = vld [vmem:[%s2] sm:$0x1]
  %v34 = vlaneseq
  %v35 = vshrl.u32 %v34, 7
  %v36 = vsub.s32 0, %v35
  %v37 = vrot.slane %v32, %v36
  %39 = vmatprep.subr.mxu0 0.0
  %40 = vmatpush1.msra.mxu0 %v16
  %41 = vmatprep.subr.mxu0 0.0
  %42 = vmatpush1.msra.mxu0 %v17
  %43 = vmatprep.subr.mxu0 0.0
  %44 = vmatpush1.msra.mxu0 %v18
  %45 = vmatprep.subr.mxu0 0.0
  %46 = vmatpush1.msra.mxu0 %v19
  %47 = vmatprep.subr.mxu0 0.0
  %48 = vmatpush1.msra.mxu0 %v20
  %49 = vmatprep.subr.mxu0 0.0
  %50 = vmatpush1.msra.mxu0 %v21
  %51 = vmatprep.subr.mxu0 0.0
  %52 = vmatpush1.msra.mxu0 %v22
  %53 = vmatprep.subr.mxu0 0.0
  %54 = vmatpush1.msra.mxu0 %v23
  %55 = vmatprep.subr.mxu0 0.0
  %56 = vmatpush1.msra.mxu0 %v24
  %57 = vmatprep.subr.mxu0 0.0
  %58 = vmatpush1.msra.mxu0 %v25
  %59 = vmatprep.subr.mxu0 0.0
  %60 = vmatpush1.msra.mxu0 %v26
  %61 = vmatprep.subr.mxu0 0.0
  %62 = vmatpush1.msra.mxu0 %v27
  %63 = vmatprep.subr.mxu0 0.0
  %64 = vmatpush1.msra.mxu0 %v28
  %65 = vmatprep.subr.mxu0 0.0
  %66 = vmatpush1.msra.mxu0 %v29
  %67 = vmatprep.subr.mxu0 0.0
  %68 = vmatpush1.msra.mxu0 %v30
  %69 = vmatprep.subr.mxu0 0.0
  %70 = vmatpush1.msra.mxu0 %v31
  %71 = vmatprep.subr.mxu0 0.0
  %72 = vmatpush1.msra.mxu0 0.0
  %73 = vmatprep.subr.mxu0 0.0
  %74 = vmatpush1.msra.mxu0 0.0
  %75 = vmatprep.subr.mxu0 0.0
  %76 = vmatpush1.msra.mxu0 0.0
  %77 = vmatprep.subr.mxu0 0.0
  %78 = vmatpush1.msra.mxu0 0.0
  %79 = vmatprep.subr.mxu0 0.0
  %80 = vmatpush1.msra.mxu0 0.0
  %81 = vmatprep.subr.mxu0 0.0
  %82 = vmatpush1.msra.mxu0 0.0
  %83 = vmatprep.subr.mxu0 0.0
  %84 = vmatpush1.msra.mxu0 0.0
  %85 = vmatprep.subr.mxu0 0.0
  %86 = vmatpush1.msra.mxu0 0.0
  %87 = vmatprep.subr.mxu0 0.0
  %88 = vmatpush1.msra.mxu0 0.0
  %89 = vmatprep.subr.mxu0 0.0
  %90 = vmatpush1.msra.mxu0 0.0
  %91 = vmatprep.subr.mxu0 0.0
  %92 = vmatpush1.msra.mxu0 0.0
  %93 = vmatprep.subr.mxu0 0.0
  %94 = vmatpush1.msra.mxu0 0.0
  %95 = vmatprep.subr.mxu0 0.0
  %96 = vmatpush1.msra.mxu0 0.0
  %97 = vmatprep.subr.mxu0 0.0
  %98 = vmatpush1.msra.mxu0 0.0
  %99 = vmatprep.subr.mxu0 0.0
  %100 = vmatpush1.msra.mxu0 0.0
  %101 = vmatprep.subr.mxu0 0.0
  %102 = vmatpush1.msra.mxu0 0.0
  %103 = vmatprep.mubr.f32.mxu0 0.0
  %104 = vmatmul.mubr.f32.gmra.mrb[0].mxu0 %v14
  %v105 = vpop.f32.mrb[0].mxu0
  %v106 = vadd.f32 %v37, %v105
  %v107 = vpop.f32.mrb[0].mxu0
  %108 = vmatprep.mubr.f32.mxu0 0.0
  %109 = vmatmul.mubr.f32.gmra.mrb[0].mxu0 %v15
  %v110 = vpop.f32.mrb[0].mxu0
  %v111 = vadd.f32 %v37, %v110
  %v112 = vpop.f32.mrb[0].mxu0
  %113 = vdwg.mxu0
  %114 = vst [vmem:[%s3] sm:$0xff] %v106
  %115 = vst [vmem:[%s3 + $0x8] sm:$0xff] %v111
  // Predicated region
  $region14: #{_lambda_.5} parent=0 // pred_check
    _
  $region15: #{_lambda_.5} parent=0 // pred_check_branch
    %117 = sbr.rel (0) target = $region17
  $region16: #{_lambda_.5} parent=0 // pred_region
    _
  $region17: #{_lambda_.5} parent=0 // pred_fallthru
    _
  // Predicated region
  $region18: #{_lambda_.5} parent=0 // pred_check
    _
  $region19: #{_lambda_.5} parent=0 // pred_check_branch
    %119 = sbr.rel (0) target = $region21
  $region20: #{_lambda_.5} parent=0 // pred_region
    _
  $region21: #{_lambda_.5} parent=0 // pred_fallthru
    _

// kernel: _lambda_.4
$region0: #{_lambda_.4}
  #allocation0 [shape = 'u32[]', space=smem, size = 0x4, offset = 0x4, fixed_abs, tag = 'smem constant byte address 0x4 - core index']
  #allocation1 [shape = 'u32[144,128]{1,0:T(1,128)}', space=vmem, size = 0x12000, scoped, tag = 'internal scratch']
  %s0 = inlined_call_operand.vmem [shape: f32[2,8,512], index: 0, kind: input, shape index: {}]
  %s1 = inlined_call_operand.vmem [shape: f32[128,512], index: 1, kind: input, shape index: {}]
  %s2 = inlined_call_operand.vmem [shape: f32[2,8,128], index: 2, kind: output, shape index: {0}]
  %s3 = inlined_call_operand.vmem [shape: f32[2,1,128], index: 3, kind: output, shape index: {1}]
  %s4 = inlined_call_operand.vmem [shape: f32[2,1,128], index: 4, kind: output, shape index: {2}]
  %5 = xla_tuple %s2, %s3, %s4
  %s6 = sld [smem:[#allocation0]]
  $region61: #{_lambda_.4} parent=0
    _
  %s8 = ssub.s32 1, %s6
  %s9 = scalar_select 0, %s8, %s6
  loop: start=0, step=1, limit=4
  $region2: #{_lambda_.4} parent=0 // loop_pre_header
    _
  $region3: #{_lambda_.4} parent=0 // loop_header
    %s11 = sphi 0, %s15
    %p12 = scmp.ge.s32.totalorder %s11, 4
    %s18 = sphi 0, %s30
    %s19 = sphi 0, %s26
    %s20 = sphi 0, %s18
    %s21 = sphi 0, %s19
    %s22 = sphi 0, %s20
    %s23 = sphi 0, %s21
    %s35 = sphi 0, %s37
    %s38 = sphi 0, %s35
    %s39 = sphi 0, %s38
    %s55 = sphi 0, %s39
    %s59 = sphi 0, %s59
    %s61 = sphi 0, %s59
    %s62 = sphi 0, %s61
    %s76 = sphi 0, %s62
    %s84 = sphi 0, %s86
    %s87 = sphi 0, %s84
    %s88 = sphi 0, %s87
    %s104 = sphi 0, %s88
    %s110 = sphi 0, %s112
    %s113 = sphi 0, %s110
    %s114 = sphi 0, %s113
    %s130 = sphi 0, %s114
    %s136 = sphi 0, %s138
    %s139 = sphi 0, %s136
    %s140 = sphi 0, %s139
    %s156 = sphi 0, %s140
  $region4: #{_lambda_.4} parent=0 // loop_header_branch
    %14 = sbr.rel (%p12) target = $region8
  $region5: #{_lambda_.4} parent=0 // loop_body
    %s16 = ssub.s32 %s11, 1
    %s17 = ssub.s32 %s11, 2
    %s24 = sadd.s32 1, %s19
    %p25 = scmp.ge.s32.totalorder %s24, 1
    %s26 = scalar_select %p25, 0, %s24
    %s27 = sadd.s32 1, %s18
    %s28 = scalar_select %p25, %s27, %s18
    %p29 = scmp.ge.s32.totalorder %s28, 2
    %s30 = scalar_select %p29, 0, %s28
    %s31 = ssub.s32 %s18, %s30
    %s32 = ssub.s32 %s19, %s26
    %s33 = sor.u32 %s31, %s32
    %p34 = scmp.eq.s32.totalorder %s33, 0
    %s36 = sadd.s32 %s35, 1
    %s37 = scalar_select %p34, %s35, %s36
    %p40 = pneg %p34
    %p41 = scmp.eq.s32.totalorder %s11, 1
    %p42 = por %p40, %p41
    %p43 = scmp.ne.s32.totalorder %s35, %s38
    %p44 = scmp.eq.s32.totalorder %s11, 0
    %p45 = por %p43, %p44
    %p46 = scmp.ne.s32.totalorder %s35, %s38
    %p47 = scmp.eq.s32.totalorder %s16, 1
    %p48 = por %p46, %p47
    %p49 = scmp.ne.s32.totalorder %s38, %s39
    %p50 = scmp.eq.s32.totalorder %s16, 0
    %p51 = por %p49, %p50
    %p52 = scmp.ne.s32.totalorder %s38, %s39
    %p53 = scmp.eq.s32.totalorder %s17, 1
    %p54 = por %p52, %p53
    %p56 = scmp.ne.s32.totalorder %s39, %s55
    %p57 = scmp.eq.s32.totalorder %s17, 0
    %p58 = por %p56, %p57
    %s60 = sadd.s32 %s59, 1
    %p63 = scmp.eq.s32.totalorder %s11, 1
    %p64 = scmp.ne.s32.totalorder %s59, %s61
    %p65 = scmp.eq.s32.totalorder %s11, 0
    %p66 = por %p64, %p65
    %p67 = scmp.ne.s32.totalorder %s59, %s61
    %p68 = scmp.eq.s32.totalorder %s16, 1
    %p69 = por %p67, %p68
    %p70 = scmp.ne.s32.totalorder %s61, %s62
    %p71 = scmp.eq.s32.totalorder %s16, 0
    %p72 = por %p70, %p71
    %p73 = scmp.ne.s32.totalorder %s61, %s62
    %p74 = scmp.eq.s32.totalorder %s17, 1
    %p75 = por %p73, %p74
    %p77 = scmp.ne.s32.totalorder %s62, %s76
    %p78 = scmp.eq.s32.totalorder %s17, 0
    %p79 = por %p77, %p78
    %s80 = ssub.s32 %s18, %s30
    %s81 = ssub.s32 %s19, %s26
    %s82 = sor.u32 %s80, %s81
    %p83 = scmp.eq.s32.totalorder %s82, 0
    %s85 = sadd.s32 %s84, 1
    %s86 = scalar_select %p83, %s84, %s85
    %p89 = pneg %p83
    %p90 = scmp.eq.s32.totalorder %s11, 1
    %p91 = por %p89, %p90
    %p92 = scmp.ne.s32.totalorder %s84, %s87
    %p93 = scmp.eq.s32.totalorder %s11, 0
    %p94 = por %p92, %p93
    %p95 = scmp.ne.s32.totalorder %s84, %s87
    %p96 = scmp.eq.s32.totalorder %s16, 1
    %p97 = por %p95, %p96
    %p98 = scmp.ne.s32.totalorder %s87, %s88
    %p99 = scmp.eq.s32.totalorder %s16, 0
    %p100 = por %p98, %p99
    %p101 = scmp.ne.s32.totalorder %s87, %s88
    %p102 = scmp.eq.s32.totalorder %s17, 1
    %p103 = por %p101, %p102
    %p105 = scmp.ne.s32.totalorder %s88, %s104
    %p106 = scmp.eq.s32.totalorder %s17, 0
    %p107 = por %p105, %p106
    %s108 = ssub.s32 %s18, %s30
    %p109 = scmp.eq.s32.totalorder %s108, 0
    %s111 = sadd.s32 %s110, 1
    %s112 = scalar_select %p109, %s110, %s111
    %p115 = pneg %p109
    %p116 = scmp.eq.s32.totalorder %s11, 1
    %p117 = por %p115, %p116
    %p118 = scmp.ne.s32.totalorder %s110, %s113
    %p119 = scmp.eq.s32.totalorder %s11, 0
    %p120 = por %p118, %p119
    %p121 = scmp.ne.s32.totalorder %s110, %s113
    %p122 = scmp.eq.s32.totalorder %s16, 1
    %p123 = por %p121, %p122
    %p124 = scmp.ne.s32.totalorder %s113, %s114
    %p125 = scmp.eq.s32.totalorder %s16, 0
    %p126 = por %p124, %p125
    %p127 = scmp.ne.s32.totalorder %s113, %s114
    %p128 = scmp.eq.s32.totalorder %s17, 1
    %p129 = por %p127, %p128
    %p131 = scmp.ne.s32.totalorder %s114, %s130
    %p132 = scmp.eq.s32.totalorder %s17, 0
    %p133 = por %p131, %p132
    %s134 = ssub.s32 %s18, %s30
    %p135 = scmp.eq.s32.totalorder %s134, 0
    %s137 = sadd.s32 %s136, 1
    %s138 = scalar_select %p135, %s136, %s137
    %p141 = pneg %p135
    %p142 = scmp.eq.s32.totalorder %s11, 1
    %p143 = por %p141, %p142
    %p144 = scmp.ne.s32.totalorder %s136, %s139
    %p145 = scmp.eq.s32.totalorder %s11, 0
    %p146 = por %p144, %p145
    %p147 = scmp.ne.s32.totalorder %s136, %s139
    %p148 = scmp.eq.s32.totalorder %s16, 1
    %p149 = por %p147, %p148
    %p150 = scmp.ne.s32.totalorder %s139, %s140
    %p151 = scmp.eq.s32.totalorder %s16, 0
    %p152 = por %p150, %p151
    %p153 = scmp.ne.s32.totalorder %s139, %s140
    %p154 = scmp.eq.s32.totalorder %s17, 1
    %p155 = por %p153, %p154
    %p157 = scmp.ne.s32.totalorder %s140, %s156
    %p158 = scmp.eq.s32.totalorder %s17, 0
    %p159 = por %p157, %p158
    %p160 = scmp.le.s32.totalorder 1, %s11
    %p161 = scmp.lt.s32.totalorder %s11, 3
    %p162 = pnand %p160, %p161
    %p163 = pneg %p162
    // Predicated region
    $region9: #{_lambda_.4} parent=5 // pred_check
      _
    $region10: #{_lambda_.4} parent=5 // pred_check_branch
      %165 = sbr.rel (%p162) target = $region12
    $region11: #{_lambda_.4} parent=5 // pred_region
      %s166 = ssub.s32 %s11, 1
      // Predicated region
      $region13: #{_lambda_.4} parent=11 // pred_check
        %p167 = pneg %p72
      $region14: #{_lambda_.4} parent=11 // pred_check_branch
        %169 = sbr.rel (%p167) target = $region16
      $region15: #{_lambda_.4} parent=11 // pred_region
        _
      $region16: #{_lambda_.4} parent=11 // pred_fallthru
        _
    $region12: #{_lambda_.4} parent=5 // pred_fallthru
      _
    %p170 = scmp.lt.s32.totalorder %s11, 2
    // Predicated region
    $region17: #{_lambda_.4} parent=5 // pred_check
      %p171 = pneg %p170
    $region18: #{_lambda_.4} parent=5 // pred_check_branch
      %173 = sbr.rel (%p171) target = $region20
    $region19: #{_lambda_.4} parent=5 // pred_region
      // Predicated region
      $region21: #{_lambda_.4} parent=19 // pred_check
        %p174 = pneg %p45
      $region22: #{_lambda_.4} parent=19 // pred_check_branch
        %176 = sbr.rel (%p174) target = $region24
      $region23: #{_lambda_.4} parent=19 // pred_region
        %p177 = scmp.lt.s32.totalorder %s18, 1
        %s178 = scalar_select %p177, %s18, 1
        %p179 = scmp.lt.s32.totalorder %s19, 0
        %s180 = scalar_select %p179, %s19, 0
        %s181 = smul.addr %s180, 4
        %s182 = smul.addr %s178, 4
        %s183 = sadd.s32 %s181, %s182
        %s184 = smul.addr %s183, 8
        %s185 = scalar_lea.vmem %s0, %s184
      $region24: #{_lambda_.4} parent=19 // pred_fallthru
        _
    $region20: #{_lambda_.4} parent=5 // pred_fallthru
      _
    %p186 = scmp.le.s32.totalorder 1, %s11
    %p187 = scmp.lt.s32.totalorder %s11, 3
    %p188 = pnand %p186, %p187
    %p189 = pneg %p188
    // Predicated region
    $region25: #{_lambda_.4} parent=5 // pred_check
      _
    $region26: #{_lambda_.4} parent=5 // pred_check_branch
      %191 = sbr.rel (%p188) target = $region28
    $region27: #{_lambda_.4} parent=5 // pred_region
      %s192 = ssub.s32 %s11, 1
      %p193 = scmp.lt.s32.totalorder %s20, 1
      %s194 = scalar_select %p193, %s20, 1
      %p195 = scmp.lt.s32.totalorder %s21, 0
      %s196 = scalar_select %p195, %s21, 0
      %s197 = smul.addr %s196, 4
      %s198 = smul.addr %s194, 4
      %s199 = sadd.s32 %s197, %s198
      %s200 = smul.addr %s199, 8
      %s201 = scalar_lea.vmem %s0, %s200
      %p202 = pneg %p51
      %p203 = pneg %p48
      %p204 = pneg %p72
      %p205 = pneg %p69
      %p206 = pneg %p100
      %p207 = pneg %p97
      %p208 = scmp.lt.s32.totalorder %s20, 1
      %s209 = scalar_select %p208, %s20, 1
      %p210 = scmp.lt.s32.totalorder %s21, 0
      %s211 = scalar_select %p210, %s21, 0
      %s212 = sadd.s32 %s211, %s209
      %s213 = smul.addr %s212, 8
      %s214 = scalar_lea.vmem %s2, %s213
      %p215 = pneg %p126
      %p216 = pneg %p123
      %p217 = scmp.lt.s32.totalorder %s20, 1
      %s218 = scalar_select %p217, %s20, 1
      %s219 = scalar_lea.vmem %s3, %s218
      %p220 = pneg %p152
      %p221 = pneg %p149
      %p222 = scmp.lt.s32.totalorder %s20, 1
      %s223 = scalar_select %p222, %s20, 1
      %s224 = scalar_lea.vmem %s4, %s223
      %p225 = scmp.lt.s32.totalorder %s20, 1
      %s226 = scalar_select %p225, %s20, 1
      %p227 = scmp.lt.s32.totalorder %s21, 0
      %s228 = scalar_select %p227, %s21, 0
      %s229 = smul.addr %s228, 4
      %s230 = smul.addr %s226, 4
      %s231 = sadd.s32 %s229, %s230
      %s232 = smul.addr %s231, 8
      %s233 = scalar_lea.vmem %s0, %s232
      %p234 = scmp.lt.s32.totalorder %s20, 1
      %s235 = scalar_select %p234, %s20, 1
      %p236 = scmp.lt.s32.totalorder %s21, 0
      %s237 = scalar_select %p236, %s21, 0
      %s238 = sadd.s32 %s237, %s235
      %s239 = smul.addr %s238, 8
      %s240 = scalar_lea.vmem %s2, %s239
      %p241 = scmp.lt.s32.totalorder %s20, 1
      %s242 = scalar_select %p241, %s20, 1
      %s243 = scalar_lea.vmem %s3, %s242
      %p244 = scmp.lt.s32.totalorder %s20, 1
      %s245 = scalar_select %p244, %s20, 1
      %s246 = scalar_lea.vmem %s4, %s245
      %p247 = scmp.eq.s32.totalorder %s21, 0
      // Predicated region
      $region29: #{_lambda_.4} parent=27 // pred_check
        %p248 = pneg %p247
      $region30: #{_lambda_.4} parent=27 // pred_check_branch
        %250 = sbr.rel (%p248) target = $region32
      $region31: #{_lambda_.4} parent=27 // pred_region
        %251 = vst [vmem:[%s243] sm:$0x1] 0.0
        %252 = vst [vmem:[%s246] sm:$0x1] 0.0
      $region32: #{_lambda_.4} parent=27 // pred_fallthru
        _
      %v253 = vld [vmem:[%s1] sm:$0xff]
      %v254 = vld [vmem:[%s1 + $0x8] sm:$0xff]
      %v255 = vld [vmem:[%s1 + $0x10] sm:$0xff]
      %v256 = vld [vmem:[%s1 + $0x18] sm:$0xff]
      %v257 = vld [vmem:[%s1 + $0x20] sm:$0xff]
      %v258 = vld [vmem:[%s1 + $0x28] sm:$0xff]
      %v259 = vld [vmem:[%s1 + $0x30] sm:$0xff]
      %v260 = vld [vmem:[%s1 + $0x38] sm:$0xff]
      %v261 = vld [vmem:[%s1 + $0x40] sm:$0xff]
      %v262 = vld [vmem:[%s1 + $0x48] sm:$0xff]
      %v263 = vld [vmem:[%s1 + $0x50] sm:$0xff]
      %v264 = vld [vmem:[%s1 + $0x58] sm:$0xff]
      %v265 = vld [vmem:[%s1 + $0x60] sm:$0xff]
      %v266 = vld [vmem:[%s1 + $0x68] sm:$0xff]
      %v267 = vld [vmem:[%s1 + $0x70] sm:$0xff]
      %v268 = vld [vmem:[%s1 + $0x78] sm:$0xff]
      %v269 = vld [vmem:[%s1 + $0x80] sm:$0xff]
      %v270 = vld [vmem:[%s1 + $0x88] sm:$0xff]
      %v271 = vld [vmem:[%s1 + $0x90] sm:$0xff]
      %v272 = vld [vmem:[%s1 + $0x98] sm:$0xff]
      %v273 = vld [vmem:[%s1 + $0xa0] sm:$0xff]
      %v274 = vld [vmem:[%s1 + $0xa8] sm:$0xff]
      %v275 = vld [vmem:[%s1 + $0xb0] sm:$0xff]
      %v276 = vld [vmem:[%s1 + $0xb8] sm:$0xff]
      %v277 = vld [vmem:[%s1 + $0xc0] sm:$0xff]
      %v278 = vld [vmem:[%s1 + $0xc8] sm:$0xff]
      %v279 = vld [vmem:[%s1 + $0xd0] sm:$0xff]
      %v280 = vld [vmem:[%s1 + $0xd8] sm:$0xff]
      %v281 = vld [vmem:[%s1 + $0xe0] sm:$0xff]
      %v282 = vld [vmem:[%s1 + $0xe8] sm:$0xff]
      %v283 = vld [vmem:[%s1 + $0xf0] sm:$0xff]
      %v284 = vld [vmem:[%s1 + $0xf8] sm:$0xff]
      %v285 = vld [vmem:[%s1 + $0x100] sm:$0xff]
      %v286 = vld [vmem:[%s1 + $0x108] sm:$0xff]
      %v287 = vld [vmem:[%s1 + $0x110] sm:$0xff]
      %v288 = vld [vmem:[%s1 + $0x118] sm:$0xff]
      %v289 = vld [vmem:[%s1 + $0x120] sm:$0xff]
      %v290 = vld [vmem:[%s1 + $0x128] sm:$0xff]
      %v291 = vld [vmem:[%s1 + $0x130] sm:$0xff]
      %v292 = vld [vmem:[%s1 + $0x138] sm:$0xff]
      %v293 = vld [vmem:[%s1 + $0x140] sm:$0xff]
      %v294 = vld [vmem:[%s1 + $0x148] sm:$0xff]
      %v295 = vld [vmem:[%s1 + $0x150] sm:$0xff]
      %v296 = vld [vmem:[%s1 + $0x158] sm:$0xff]
      %v297 = vld [vmem:[%s1 + $0x160] sm:$0xff]
      %v298 = vld [vmem:[%s1 + $0x168] sm:$0xff]
      %v299 = vld [vmem:[%s1 + $0x170] sm:$0xff]
      %v300 = vld [vmem:[%s1 + $0x178] sm:$0xff]
      %v301 = vld [vmem:[%s1 + $0x180] sm:$0xff]
      %v302 = vld [vmem:[%s1 + $0x188] sm:$0xff]
      %v303 = vld [vmem:[%s1 + $0x190] sm:$0xff]
      %v304 = vld [vmem:[%s1 + $0x198] sm:$0xff]
      %v305 = vld [vmem:[%s1 + $0x1a0] sm:$0xff]
      %v306 = vld [vmem:[%s1 + $0x1a8] sm:$0xff]
      %v307 = vld [vmem:[%s1 + $0x1b0] sm:$0xff]
      %v308 = vld [vmem:[%s1 + $0x1b8] sm:$0xff]
      %v309 = vld [vmem:[%s1 + $0x1c0] sm:$0xff]
      %v310 = vld [vmem:[%s1 + $0x1c8] sm:$0xff]
      %v311 = vld [vmem:[%s1 + $0x1d0] sm:$0xff]
      %v312 = vld [vmem:[%s1 + $0x1d8] sm:$0xff]
      %v313 = vld [vmem:[%s1 + $0x1e0] sm:$0xff]
      %v314 = vld [vmem:[%s1 + $0x1e8] sm:$0xff]
      %v315 = vld [vmem:[%s1 + $0x1f0] sm:$0xff]
      %v316 = vld [vmem:[%s1 + $0x1f8] sm:$0xff]
      %v317 = vld [vmem:[%s243] sm:$0x1]
      %v318 = vld [vmem:[%s246] sm:$0x1]
      %v319 = vld [vmem:[%s233] ss:$8 sm:$0xf]
      %320 = vmatprep.subr.mxu0 %v254
      %321 = vmatpush1.msra.mxu0 %v253
      %322 = vmatprep.subr.mxu0 %v258
      %323 = vmatpush1.msra.mxu0 %v257
      %324 = vmatprep.subr.mxu0 %v262
      %325 = vmatpush1.msra.mxu0 %v261
      %326 = vmatprep.subr.mxu0 %v266
      %327 = vmatpush1.msra.mxu0 %v265
      %328 = vmatprep.subr.mxu0 %v270
      %329 = vmatpush1.msra.mxu0 %v269
      %330 = vmatprep.subr.mxu0 %v274
      %331 = vmatpush1.msra.mxu0 %v273
      %332 = vmatprep.subr.mxu0 %v278
      %333 = vmatpush1.msra.mxu0 %v277
      %334 = vmatprep.subr.mxu0 %v282
      %335 = vmatpush1.msra.mxu0 %v281
      %336 = vmatprep.subr.mxu0 %v286
      %337 = vmatpush1.msra.mxu0 %v285
      %338 = vmatprep.subr.mxu0 %v290
      %339 = vmatpush1.msra.mxu0 %v289
      %340 = vmatprep.subr.mxu0 %v294
      %341 = vmatpush1.msra.mxu0 %v293
      %342 = vmatprep.subr.mxu0 %v298
      %343 = vmatpush1.msra.mxu0 %v297
      %344 = vmatprep.subr.mxu0 %v302
      %345 = vmatpush1.msra.mxu0 %v301
      %346 = vmatprep.subr.mxu0 %v306
      %347 = vmatpush1.msra.mxu0 %v305
      %348 = vmatprep.subr.mxu0 %v310
      %349 = vmatpush1.msra.mxu0 %v309
      %350 = vmatprep.subr.mxu0 %v314
      %351 = vmatpush1.msra.mxu0 %v313
      %352 = vmatprep.subr.mxu0 0.0
      %353 = vmatpush1.msra.mxu0 0.0
      %354 = vmatprep.subr.mxu0 0.0
      %355 = vmatpush1.msra.mxu0 0.0
      %356 = vmatprep.subr.mxu0 0.0
      %357 = vmatpush1.msra.mxu0 0.0
      %358 = vmatprep.subr.mxu0 0.0
      %359 = vmatpush1.msra.mxu0 0.0
      %360 = vmatprep.subr.mxu0 0.0
      %361 = vmatpush1.msra.mxu0 0.0
      %362 = vmatprep.subr.mxu0 0.0
      %363 = vmatpush1.msra.mxu0 0.0
      %364 = vmatprep.subr.mxu0 0.0
      %365 = vmatpush1.msra.mxu0 0.0
      %366 = vmatprep.subr.mxu0 0.0
      %367 = vmatpush1.msra.mxu0 0.0
      %368 = vmatprep.subr.mxu0 0.0
      %369 = vmatpush1.msra.mxu0 0.0
      %370 = vmatprep.subr.mxu0 0.0
      %371 = vmatpush1.msra.mxu0 0.0
      %372 = vmatprep.subr.mxu0 0.0
      %373 = vmatpush1.msra.mxu0 0.0
      %374 = vmatprep.subr.mxu0 0.0
      %375 = vmatpush1.msra.mxu0 0.0
      %376 = vmatprep.subr.mxu0 0.0
      %377 = vmatpush1.msra.mxu0 0.0
      %378 = vmatprep.subr.mxu0 0.0
      %379 = vmatpush1.msra.mxu0 0.0
      %380 = vmatprep.subr.mxu0 0.0
      %381 = vmatpush1.msra.mxu0 0.0
      %382 = vmatprep.subr.mxu0 0.0
      %383 = vmatpush1.msra.mxu0 0.0
      %384 = vmatprep.mubr.f32.mxu0 0.0
      %385 = vmatmul.mubr.f32.gmra.mrb[0].mxu0 %v317
      %v386 = vpop.f32.mrb[0].mxu0
      %v387 = vadd.f32 0.0, %v386
      %v388 = vpop.f32.mrb[0].mxu0
      %v389 = vadd.f32 0.0, %v388
      %390 = vdwg.mxu0
      %391 = vmatprep.subr.mxu0 %v256
      %392 = vmatpush1.msra.mxu0 %v255
      %393 = vmatprep.subr.mxu0 %v260
      %394 = vmatpush1.msra.mxu0 %v259
      %395 = vmatprep.subr.mxu0 %v264
      %396 = vmatpush1.msra.mxu0 %v263
      %397 = vmatprep.subr.mxu0 %v268
      %398 = vmatpush1.msra.mxu0 %v267
      %399 = vmatprep.subr.mxu0 %v272
      %400 = vmatpush1.msra.mxu0 %v271
      %401 = vmatprep.subr.mxu0 %v276
      %402 = vmatpush1.msra.mxu0 %v275
      %403 = vmatprep.subr.mxu0 %v280
      %404 = vmatpush1.msra.mxu0 %v279
      %405 = vmatprep.subr.mxu0 %v284
      %406 = vmatpush1.msra.mxu0 %v283
      %407 = vmatprep.subr.mxu0 %v288
      %408 = vmatpush1.msra.mxu0 %v287
      %409 = vmatprep.subr.mxu0 %v292
      %410 = vmatpush1.msra.mxu0 %v291
      %411 = vmatprep.subr.mxu0 %v296
      %412 = vmatpush1.msra.mxu0 %v295
      %413 = vmatprep.subr.mxu0 %v300
      %414 = vmatpush1.msra.mxu0 %v299
      %415 = vmatprep.subr.mxu0 %v304
      %416 = vmatpush1.msra.mxu0 %v303
      %417 = vmatprep.subr.mxu0 %v308
      %418 = vmatpush1.msra.mxu0 %v307
      %419 = vmatprep.subr.mxu0 %v312
      %420 = vmatpush1.msra.mxu0 %v311
      %421 = vmatprep.subr.mxu0 %v316
      %422 = vmatpush1.msra.mxu0 %v315
      %423 = vmatprep.subr.mxu0 0.0
      %424 = vmatpush1.msra.mxu0 0.0
      %425 = vmatprep.subr.mxu0 0.0
      %426 = vmatpush1.msra.mxu0 0.0
      %427 = vmatprep.subr.mxu0 0.0
      %428 = vmatpush1.msra.mxu0 0.0
      %429 = vmatprep.subr.mxu0 0.0
      %430 = vmatpush1.msra.mxu0 0.0
      %431 = vmatprep.subr.mxu0 0.0
      %432 = vmatpush1.msra.mxu0 0.0
      %433 = vmatprep.subr.mxu0 0.0
      %434 = vmatpush1.msra.mxu0 0.0
      %435 = vmatprep.subr.mxu0 0.0
      %436 = vmatpush1.msra.mxu0 0.0
      %437 = vmatprep.subr.mxu0 0.0
      %438 = vmatpush1.msra.mxu0 0.0
      %439 = vmatprep.subr.mxu0 0.0
      %440 = vmatpush1.msra.mxu0 0.0
      %441 = vmatprep.subr.mxu0 0.0
      %442 = vmatpush1.msra.mxu0 0.0
      %443 = vmatprep.subr.mxu0 0.0
      %444 = vmatpush1.msra.mxu0 0.0
      %445 = vmatprep.subr.mxu0 0.0
      %446 = vmatpush1.msra.mxu0 0.0
      %447 = vmatprep.subr.mxu0 0.0
      %448 = vmatpush1.msra.mxu0 0.0
      %449 = vmatprep.subr.mxu0 0.0
      %450 = vmatpush1.msra.mxu0 0.0
      %451 = vmatprep.subr.mxu0 0.0
      %452 = vmatpush1.msra.mxu0 0.0
      %453 = vmatprep.subr.mxu0 0.0
      %454 = vmatpush1.msra.mxu0 0.0
      %455 = vmatprep.mubr.f32.mxu0 0.0
      %456 = vmatmul.mubr.f32.gmra.mrb[0].mxu0 %v317
      %v457 = vpop.f32.mrb[0].mxu0
      %v458 = vadd.f32 0.0, %v457
      %v459 = vpop.f32.mrb[0].mxu0
      %v460 = vadd.f32 0.0, %v459
      %461 = vdwg.mxu0
      %v466 = vcombine.low %v387, %v389
      %v467 = vcombine.low %v458, %v460
      %v469 = vunpack.c.l.s4 1966171168
      %v470 = vunpack.c.0.s8 %v469
      %v471 = vlaneseq
      %v472 = vshrl.u32 %v471, 7
      %v473 = vsub.s32 %v470, %v472
      %v474 = vrot.slane %v466, %v473
      %v476 = vunpack.c.l.s4 1966171168
      %v477 = vunpack.c.0.s8 %v476
      %v478 = vlaneseq
      %v479 = vshrl.u32 %v478, 7
      %v480 = vsub.s32 %v477, %v479
      %v481 = vrot.slane %v467, %v480
      %v482 = vcombine.low %v474, %v481
      %v484 = vunpack.c.l.s4 1966171168
      %v485 = vunpack.c.0.s8 %v484
      %v486 = vlaneseq
      %v487 = vshrl.u32 %v486, 7
      %v488 = vsub.s32 %v485, %v487
      %v489 = vrot.slane %v482, %v488
      %v491 = vadd.f32 %v319, %v489
      %v492 = vxor.u32 %v491, 2147483648
      %v493 = vmul.f32 %v492, 1.442695
      %v494 = vpow.pop %v493
      %v495 = vadd.f32 %v494, 1.0
      %v496 = vrcp.pop %v495
      %v497 = vmul.f32 1.0, %v496
      %v499 = vrot.slane %v491, 1
      %v501 = vxor.u32 %v499, 2147483648
      %v502 = vmul.f32 %v501, 1.442695
      %v503 = vpow.pop %v502
      %v504 = vadd.f32 %v503, 1.0
      %v505 = vrcp.pop %v504
      %v506 = vmul.f32 1.0, %v505
      %v507 = vrot.slane %v491, 2
      %v509 = vtanh.pop %v507
      %v510 = vrot.slane %v491, 3
      %v512 = vxor.u32 %v510, 2147483648
      %v513 = vmul.f32 %v512, 1.442695
      %v514 = vpow.pop %v513
      %v515 = vadd.f32 %v514, 1.0
      %v516 = vrcp.pop %v515
      %v517 = vmul.f32 1.0, %v516
      %v518 = vmul.f32 %v506, %v318
      %v519 = vmul.f32 %v497, %v509
      %v520 = vadd.f32 %v518, %v519
      %v521 = vtanh.pop %v520
      %v522 = vmul.f32 %v517, %v521
      %523 = vst [vmem:[%s240] sm:$0x1] %v522
      %s524 = scalar_lea.vmem %s233, 1
      %v525 = vld [vmem:[%s524] ss:$8 sm:$0xf]
      %526 = vmatprep.subr.mxu0 %v254
      %527 = vmatpush1.msra.mxu0 %v253
      %528 = vmatprep.subr.mxu0 %v258
      %529 = vmatpush1.msra.mxu0 %v257
      %530 = vmatprep.subr.mxu0 %v262
      %531 = vmatpush1.msra.mxu0 %v261
      %532 = vmatprep.subr.mxu0 %v266
      %533 = vmatpush1.msra.mxu0 %v265
      %534 = vmatprep.subr.mxu0 %v270
      %535 = vmatpush1.msra.mxu0 %v269
      %536 = vmatprep.subr.mxu0 %v274
      %537 = vmatpush1.msra.mxu0 %v273
      %538 = vmatprep.subr.mxu0 %v278
      %539 = vmatpush1.msra.mxu0 %v277
      %540 = vmatprep.subr.mxu0 %v282
      %541 = vmatpush1.msra.mxu0 %v281
      %542 = vmatprep.subr.mxu0 %v286
      %543 = vmatpush1.msra.mxu0 %v285
      %544 = vmatprep.subr.mxu0 %v290
      %545 = vmatpush1.msra.mxu0 %v289
      %546 = vmatprep.subr.mxu0 %v294
      %547 = vmatpush1.msra.mxu0 %v293
      %548 = vmatprep.subr.mxu0 %v298
      %549 = vmatpush1.msra.mxu0 %v297
      %550 = vmatprep.subr.mxu0 %v302
      %551 = vmatpush1.msra.mxu0 %v301
      %552 = vmatprep.subr.mxu0 %v306
      %553 = vmatpush1.msra.mxu0 %v305
      %554 = vmatprep.subr.mxu0 %v310
      %555 = vmatpush1.msra.mxu0 %v309
      %556 = vmatprep.subr.mxu0 %v314
      %557 = vmatpush1.msra.mxu0 %v313
      %558 = vmatprep.subr.mxu0 0.0
      %559 = vmatpush1.msra.mxu0 0.0
      %560 = vmatprep.subr.mxu0 0.0
      %561 = vmatpush1.msra.mxu0 0.0
      %562 = vmatprep.subr.mxu0 0.0
      %563 = vmatpush1.msra.mxu0 0.0
      %564 = vmatprep.subr.mxu0 0.0
      %565 = vmatpush1.msra.mxu0 0.0
      %566 = vmatprep.subr.mxu0 0.0
      %567 = vmatpush1.msra.mxu0 0.0
      %568 = vmatprep.subr.mxu0 0.0
      %569 = vmatpush1.msra.mxu0 0.0
      %570 = vmatprep.subr.mxu0 0.0
      %571 = vmatpush1.msra.mxu0 0.0
      %572 = vmatprep.subr.mxu0 0.0
      %573 = vmatpush1.msra.mxu0 0.0
      %574 = vmatprep.subr.mxu0 0.0
      %575 = vmatpush1.msra.mxu0 0.0
      %576 = vmatprep.subr.mxu0 0.0
      %577 = vmatpush1.msra.mxu0 0.0
      %578 = vmatprep.subr.mxu0 0.0
      %579 = vmatpush1.msra.mxu0 0.0
      %580 = vmatprep.subr.mxu0 0.0
      %581 = vmatpush1.msra.mxu0 0.0
      %582 = vmatprep.subr.mxu0 0.0
      %583 = vmatpush1.msra.mxu0 0.0
      %584 = vmatprep.subr.mxu0 0.0
      %585 = vmatpush1.msra.mxu0 0.0
      %586 = vmatprep.subr.mxu0 0.0
      %587 = vmatpush1.msra.mxu0 0.0
      %588 = vmatprep.subr.mxu0 0.0
      %589 = vmatpush1.msra.mxu0 0.0
      %590 = vmatprep.mubr.f32.mxu0 0.0
      %591 = vmatmul.mubr.f32.gmra.mrb[0].mxu0 %v522
      %v592 = vpop.f32.mrb[0].mxu0
      %v593 = vadd.f32 0.0, %v592
      %v594 = vpop.f32.mrb[0].mxu0
      %v595 = vadd.f32 0.0, %v594
      %596 = vdwg.mxu0
      %597 = vmatprep.subr.mxu0 %v256
      %598 = vmatpush1.msra.mxu0 %v255
      %599 = vmatprep.subr.mxu0 %v260
      %600 = vmatpush1.msra.mxu0 %v259
      %601 = vmatprep.subr.mxu0 %v264
      %602 = vmatpush1.msra.mxu0 %v263
      %603 = vmatprep.subr.mxu0 %v268
      %604 = vmatpush1.msra.mxu0 %v267
      %605 = vmatprep.subr.mxu0 %v272
      %606 = vmatpush1.msra.mxu0 %v271
      %607 = vmatprep.subr.mxu0 %v276
      %608 = vmatpush1.msra.mxu0 %v275
      %609 = vmatprep.subr.mxu0 %v280
      %610 = vmatpush1.msra.mxu0 %v279
      %611 = vmatprep.subr.mxu0 %v284
      %612 = vmatpush1.msra.mxu0 %v283
      %613 = vmatprep.subr.mxu0 %v288
      %614 = vmatpush1.msra.mxu0 %v287
      %615 = vmatprep.subr.mxu0 %v292
      %616 = vmatpush1.msra.mxu0 %v291
      %617 = vmatprep.subr.mxu0 %v296
      %618 = vmatpush1.msra.mxu0 %v295
      %619 = vmatprep.subr.mxu0 %v300
      %620 = vmatpush1.msra.mxu0 %v299
      %621 = vmatprep.subr.mxu0 %v304
      %622 = vmatpush1.msra.mxu0 %v303
      %623 = vmatprep.subr.mxu0 %v308
      %624 = vmatpush1.msra.mxu0 %v307
      %625 = vmatprep.subr.mxu0 %v312
      %626 = vmatpush1.msra.mxu0 %v311
      %627 = vmatprep.subr.mxu0 %v316
      %628 = vmatpush1.msra.mxu0 %v315
      %629 = vmatprep.subr.mxu0 0.0
      %630 = vmatpush1.msra.mxu0 0.0
      %631 = vmatprep.subr.mxu0 0.0
      %632 = vmatpush1.msra.mxu0 0.0
      %633 = vmatprep.subr.mxu0 0.0
      %634 = vmatpush1.msra.mxu0 0.0
      %635 = vmatprep.subr.mxu0 0.0
      %636 = vmatpush1.msra.mxu0 0.0
      %637 = vmatprep.subr.mxu0 0.0
      %638 = vmatpush1.msra.mxu0 0.0
      %639 = vmatprep.subr.mxu0 0.0
      %640 = vmatpush1.msra.mxu0 0.0
      %641 = vmatprep.subr.mxu0 0.0
      %642 = vmatpush1.msra.mxu0 0.0
      %643 = vmatprep.subr.mxu0 0.0
      %644 = vmatpush1.msra.mxu0 0.0
      %645 = vmatprep.subr.mxu0 0.0
      %646 = vmatpush1.msra.mxu0 0.0
      %647 = vmatprep.subr.mxu0 0.0
      %648 = vmatpush1.msra.mxu0 0.0
      %649 = vmatprep.subr.mxu0 0.0
      %650 = vmatpush1.msra.mxu0 0.0
      %651 = vmatprep.subr.mxu0 0.0
      %652 = vmatpush1.msra.mxu0 0.0
      %653 = vmatprep.subr.mxu0 0.0
      %654 = vmatpush1.msra.mxu0 0.0
      %655 = vmatprep.subr.mxu0 0.0
      %656 = vmatpush1.msra.mxu0 0.0
      %657 = vmatprep.subr.mxu0 0.0
      %658 = vmatpush1.msra.mxu0 0.0
      %659 = vmatprep.subr.mxu0 0.0
      %660 = vmatpush1.msra.mxu0 0.0
      %661 = vmatprep.mubr.f32.mxu0 0.0
      %662 = vmatmul.mubr.f32.gmra.mrb[0].mxu0 %v522
      %v663 = vpop.f32.mrb[0].mxu0
      %v664 = vadd.f32 0.0, %v663
      %v665 = vpop.f32.mrb[0].mxu0
      %v666 = vadd.f32 0.0, %v665
      %667 = vdwg.mxu0
      %v672 = vcombine.low %v593, %v595
      %v673 = vcombine.low %v664, %v666
      %v675 = vunpack.c.l.s4 1966171168
      %v676 = vunpack.c.0.s8 %v675
      %v677 = vlaneseq
      %v678 = vshrl.u32 %v677, 7
      %v679 = vsub.s32 %v676, %v678
      %v680 = vrot.slane %v672, %v679
      %v682 = vunpack.c.l.s4 1966171168
      %v683 = vunpack.c.0.s8 %v682
      %v684 = vlaneseq
      %v685 = vshrl.u32 %v684, 7
      %v686 = vsub.s32 %v683, %v685
      %v687 = vrot.slane %v673, %v686
      %v688 = vcombine.low %v680, %v687
      %v690 = vunpack.c.l.s4 1966171168
      %v691 = vunpack.c.0.s8 %v690
      %v692 = vlaneseq
      %v693 = vshrl.u32 %v692, 7
      %v694 = vsub.s32 %v691, %v693
      %v695 = vrot.slane %v688, %v694
      %v697 = vadd.f32 %v525, %v695
      %v698 = vxor.u32 %v697, 2147483648
      %v699 = vmul.f32 %v698, 1.442695
      %v700 = vpow.pop %v699
      %v701 = vadd.f32 %v700, 1.0
      %v702 = vrcp.pop %v701
      %v703 = vmul.f32 1.0, %v702
      %v705 = vrot.slane %v697, 1
      %v707 = vxor.u32 %v705, 2147483648
      %v708 = vmul.f32 %v707, 1.442695
      %v709 = vpow.pop %v708
      %v710 = vadd.f32 %v709, 1.0
      %v711 = vrcp.pop %v710
      %v712 = vmul.f32 1.0, %v711
      %v713 = vrot.slane %v697, 2
      %v715 = vtanh.pop %v713
      %v716 = vrot.slane %v697, 3
      %v718 = vxor.u32 %v716, 2147483648
      %v719 = vmul.f32 %v718, 1.442695
      %v720 = vpow.pop %v719
      %v721 = vadd.f32 %v720, 1.0
      %v722 = vrcp.pop %v721
      %v723 = vmul.f32 1.0, %v722
      %v724 = vmul.f32 %v712, %v520
      %v725 = vmul.f32 %v703, %v715
      %v726 = vadd.f32 %v724, %v725
      %v727 = vtanh.pop %v726
      %v728 = vmul.f32 %v723, %v727
      %729 = vst [vmem:[%s240 + $0x1] sm:$0x1] %v728
      %s730 = scalar_lea.vmem %s233, 2
      %v731 = vld [vmem:[%s730] ss:$8 sm:$0xf]
      %732 = vmatprep.subr.mxu0 %v254
      %733 = vmatpush1.msra.mxu0 %v253
      %734 = vmatprep.subr.mxu0 %v258
      %735 = vmatpush1.msra.mxu0 %v257
      %736 = vmatprep.subr.mxu0 %v262
      %737 = vmatpush1.msra.mxu0 %v261
      %738 = vmatprep.subr.mxu0 %v266
      %739 = vmatpush1.msra.mxu0 %v265
      %740 = vmatprep.subr.mxu0 %v270
      %741 = vmatpush1.msra.mxu0 %v269
      %742 = vmatprep.subr.mxu0 %v274
      %743 = vmatpush1.msra.mxu0 %v273
      %744 = vmatprep.subr.mxu0 %v278
      %745 = vmatpush1.msra.mxu0 %v277
      %746 = vmatprep.subr.mxu0 %v282
      %747 = vmatpush1.msra.mxu0 %v281
      %748 = vmatprep.subr.mxu0 %v286
      %749 = vmatpush1.msra.mxu0 %v285
      %750 = vmatprep.subr.mxu0 %v290
      %751 = vmatpush1.msra.mxu0 %v289
      %752 = vmatprep.subr.mxu0 %v294
      %753 = vmatpush1.msra.mxu0 %v293
      %754 = vmatprep.subr.mxu0 %v298
      %755 = vmatpush1.msra.mxu0 %v297
      %756 = vmatprep.subr.mxu0 %v302
      %757 = vmatpush1.msra.mxu0 %v301
      %758 = vmatprep.subr.mxu0 %v306
      %759 = vmatpush1.msra.mxu0 %v305
      %760 = vmatprep.subr.mxu0 %v310
      %761 = vmatpush1.msra.mxu0 %v309
      %762 = vmatprep.subr.mxu0 %v314
      %763 = vmatpush1.msra.mxu0 %v313
      %764 = vmatprep.subr.mxu0 0.0
      %765 = vmatpush1.msra.mxu0 0.0
      %766 = vmatprep.subr.mxu0 0.0
      %767 = vmatpush1.msra.mxu0 0.0
      %768 = vmatprep.subr.mxu0 0.0
      %769 = vmatpush1.msra.mxu0 0.0
      %770 = vmatprep.subr.mxu0 0.0
      %771 = vmatpush1.msra.mxu0 0.0
      %772 = vmatprep.subr.mxu0 0.0
      %773 = vmatpush1.msra.mxu0 0.0
      %774 = vmatprep.subr.mxu0 0.0
      %775 = vmatpush1.msra.mxu0 0.0
      %776 = vmatprep.subr.mxu0 0.0
      %777 = vmatpush1.msra.mxu0 0.0
      %778 = vmatprep.subr.mxu0 0.0
      %779 = vmatpush1.msra.mxu0 0.0
      %780 = vmatprep.subr.mxu0 0.0
      %781 = vmatpush1.msra.mxu0 0.0
      %782 = vmatprep.subr.mxu0 0.0
      %783 = vmatpush1.msra.mxu0 0.0
      %784 = vmatprep.subr.mxu0 0.0
      %785 = vmatpush1.msra.mxu0 0.0
      %786 = vmatprep.subr.mxu0 0.0
      %787 = vmatpush1.msra.mxu0 0.0
      %788 = vmatprep.subr.mxu0 0.0
      %789 = vmatpush1.msra.mxu0 0.0
      %790 = vmatprep.subr.mxu0 0.0
      %791 = vmatpush1.msra.mxu0 0.0
      %792 = vmatprep.subr.mxu0 0.0
      %793 = vmatpush1.msra.mxu0 0.0
      %794 = vmatprep.subr.mxu0 0.0
      %795 = vmatpush1.msra.mxu0 0.0
      %796 = vmatprep.mubr.f32.mxu0 0.0
      %797 = vmatmul.mubr.f32.gmra.mrb[0].mxu0 %v728
      %v798 = vpop.f32.mrb[0].mxu0
      %v799 = vadd.f32 0.0, %v798
      %v800 = vpop.f32.mrb[0].mxu0
      %v801 = vadd.f32 0.0, %v800
      %802 = vdwg.mxu0
      %803 = vmatprep.subr.mxu0 %v256
      %804 = vmatpush1.msra.mxu0 %v255
      %805 = vmatprep.subr.mxu0 %v260
      %806 = vmatpush1.msra.mxu0 %v259
      %807 = vmatprep.subr.mxu0 %v264
      %808 = vmatpush1.msra.mxu0 %v263
      %809 = vmatprep.subr.mxu0 %v268
      %810 = vmatpush1.msra.mxu0 %v267
      %811 = vmatprep.subr.mxu0 %v272
      %812 = vmatpush1.msra.mxu0 %v271
      %813 = vmatprep.subr.mxu0 %v276
      %814 = vmatpush1.msra.mxu0 %v275
      %815 = vmatprep.subr.mxu0 %v280
      %816 = vmatpush1.msra.mxu0 %v279
      %817 = vmatprep.subr.mxu0 %v284
      %818 = vmatpush1.msra.mxu0 %v283
      %819 = vmatprep.subr.mxu0 %v288
      %820 = vmatpush1.msra.mxu0 %v287
      %821 = vmatprep.subr.mxu0 %v292
      %822 = vmatpush1.msra.mxu0 %v291
      %823 = vmatprep.subr.mxu0 %v296
      %824 = vmatpush1.msra.mxu0 %v295
      %825 = vmatprep.subr.mxu0 %v300
      %826 = vmatpush1.msra.mxu0 %v299
      %827 = vmatprep.subr.mxu0 %v304
      %828 = vmatpush1.msra.mxu0 %v303
      %829 = vmatprep.subr.mxu0 %v308
      %830 = vmatpush1.msra.mxu0 %v307
      %831 = vmatprep.subr.mxu0 %v312
      %832 = vmatpush1.msra.mxu0 %v311
      %833 = vmatprep.subr.mxu0 %v316
      %834 = vmatpush1.msra.mxu0 %v315
      %835 = vmatprep.subr.mxu0 0.0
      %836 = vmatpush1.msra.mxu0 0.0
      %837 = vmatprep.subr.mxu0 0.0
      %838 = vmatpush1.msra.mxu0 0.0
      %839 = vmatprep.subr.mxu0 0.0
      %840 = vmatpush1.msra.mxu0 0.0
      %841 = vmatprep.subr.mxu0 0.0
      %842 = vmatpush1.msra.mxu0 0.0
      %843 = vmatprep.subr.mxu0 0.0
      %844 = vmatpush1.msra.mxu0 0.0
      %845 = vmatprep.subr.mxu0 0.0
      %846 = vmatpush1.msra.mxu0 0.0
      %847 = vmatprep.subr.mxu0 0.0
      %848 = vmatpush1.msra.mxu0 0.0
      %849 = vmatprep.subr.mxu0 0.0
      %850 = vmatpush1.msra.mxu0 0.0
      %851 = vmatprep.subr.mxu0 0.0
      %852 = vmatpush1.msra.mxu0 0.0
      %853 = vmatprep.subr.mxu0 0.0
      %854 = vmatpush1.msra.mxu0 0.0
      %855 = vmatprep.subr.mxu0 0.0
      %856 = vmatpush1.msra.mxu0 0.0
      %857 = vmatprep.subr.mxu0 0.0
      %858 = vmatpush1.msra.mxu0 0.0
      %859 = vmatprep.subr.mxu0 0.0
      %860 = vmatpush1.msra.mxu0 0.0
      %861 = vmatprep.subr.mxu0 0.0
      %862 = vmatpush1.msra.mxu0 0.0
      %863 = vmatprep.subr.mxu0 0.0
      %864 = vmatpush1.msra.mxu0 0.0
      %865 = vmatprep.subr.mxu0 0.0
      %866 = vmatpush1.msra.mxu0 0.0
      %867 = vmatprep.mubr.f32.mxu0 0.0
      %868 = vmatmul.mubr.f32.gmra.mrb[0].mxu0 %v728
      %v869 = vpop.f32.mrb[0].mxu0
      %v870 = vadd.f32 0.0, %v869
      %v871 = vpop.f32.mrb[0].mxu0
      %v872 = vadd.f32 0.0, %v871
      %873 = vdwg.mxu0
      %v878 = vcombine.low %v799, %v801
      %v879 = vcombine.low %v870, %v872
      %v881 = vunpack.c.l.s4 1966171168
      %v882 = vunpack.c.0.s8 %v881
      %v883 = vlaneseq
      %v884 = vshrl.u32 %v883, 7
      %v885 = vsub.s32 %v882, %v884
      %v886 = vrot.slane %v878, %v885
      %v888 = vunpack.c.l.s4 1966171168
      %v889 = vunpack.c.0.s8 %v888
      %v890 = vlaneseq
      %v891 = vshrl.u32 %v890, 7
      %v892 = vsub.s32 %v889, %v891
      %v893 = vrot.slane %v879, %v892
      %v894 = vcombine.low %v886, %v893
      %v896 = vunpack.c.l.s4 1966171168
      %v897 = vunpack.c.0.s8 %v896
      %v898 = vlaneseq
      %v899 = vshrl.u32 %v898, 7
      %v900 = vsub.s32 %v897, %v899
      %v901 = vrot.slane %v894, %v900
      %v903 = vadd.f32 %v731, %v901
      %v904 = vxor.u32 %v903, 2147483648
      %v905 = vmul.f32 %v904, 1.442695
      %v906 = vpow.pop %v905
      %v907 = vadd.f32 %v906, 1.0
      %v908 = vrcp.pop %v907
      %v909 = vmul.f32 1.0, %v908
      %v911 = vrot.slane %v903, 1
      %v913 = vxor.u32 %v911, 2147483648
      %v914 = vmul.f32 %v913, 1.442695
      %v915 = vpow.pop %v914
      %v916 = vadd.f32 %v915, 1.0
      %v917 = vrcp.pop %v916
      %v918 = vmul.f32 1.0, %v917
      %v919 = vrot.slane %v903, 2
      %v921 = vtanh.pop %v919
      %v922 = vrot.slane %v903, 3
      %v924 = vxor.u32 %v922, 2147483648
      %v925 = vmul.f32 %v924, 1.442695
      %v926 = vpow.pop %v925
      %v927 = vadd.f32 %v926, 1.0
      %v928 = vrcp.pop %v927
      %v929 = vmul.f32 1.0, %v928
      %v930 = vmul.f32 %v918, %v726
      %v931 = vmul.f32 %v909, %v921
      %v932 = vadd.f32 %v930, %v931
      %v933 = vtanh.pop %v932
      %v934 = vmul.f32 %v929, %v933
      %935 = vst [vmem:[%s240 + $0x2] sm:$0x1] %v934
      %s936 = scalar_lea.vmem %s233, 3
      %v937 = vld [vmem:[%s936] ss:$8 sm:$0xf]
      %938 = vmatprep.subr.mxu0 %v254
      %939 = vmatpush1.msra.mxu0 %v253
      %940 = vmatprep.subr.mxu0 %v258
      %941 = vmatpush1.msra.mxu0 %v257
      %942 = vmatprep.subr.mxu0 %v262
      %943 = vmatpush1.msra.mxu0 %v261
      %944 = vmatprep.subr.mxu0 %v266
      %945 = vmatpush1.msra.mxu0 %v265
      %946 = vmatprep.subr.mxu0 %v270
      %947 = vmatpush1.msra.mxu0 %v269
      %948 = vmatprep.subr.mxu0 %v274
      %949 = vmatpush1.msra.mxu0 %v273
      %950 = vmatprep.subr.mxu0 %v278
      %951 = vmatpush1.msra.mxu0 %v277
      %952 = vmatprep.subr.mxu0 %v282
      %953 = vmatpush1.msra.mxu0 %v281
      %954 = vmatprep.subr.mxu0 %v286
      %955 = vmatpush1.msra.mxu0 %v285
      %956 = vmatprep.subr.mxu0 %v290
      %957 = vmatpush1.msra.mxu0 %v289
      %958 = vmatprep.subr.mxu0 %v294
      %959 = vmatpush1.msra.mxu0 %v293
      %960 = vmatprep.subr.mxu0 %v298
      %961 = vmatpush1.msra.mxu0 %v297
      %962 = vmatprep.subr.mxu0 %v302
      %963 = vmatpush1.msra.mxu0 %v301
      %964 = vmatprep.subr.mxu0 %v306
      %965 = vmatpush1.msra.mxu0 %v305
      %966 = vmatprep.subr.mxu0 %v310
      %967 = vmatpush1.msra.mxu0 %v309
      %968 = vmatprep.subr.mxu0 %v314
      %969 = vmatpush1.msra.mxu0 %v313
      %970 = vmatprep.subr.mxu0 0.0
      %971 = vmatpush1.msra.mxu0 0.0
      %972 = vmatprep.subr.mxu0 0.0
      %973 = vmatpush1.msra.mxu0 0.0
      %974 = vmatprep.subr.mxu0 0.0
      %975 = vmatpush1.msra.mxu0 0.0
      %976 = vmatprep.subr.mxu0 0.0
      %977 = vmatpush1.msra.mxu0 0.0
      %978 = vmatprep.subr.mxu0 0.0
      %979 = vmatpush1.msra.mxu0 0.0
      %980 = vmatprep.subr.mxu0 0.0
      %981 = vmatpush1.msra.mxu0 0.0
      %982 = vmatprep.subr.mxu0 0.0
      %983 = vmatpush1.msra.mxu0 0.0
      %984 = vmatprep.subr.mxu0 0.0
      %985 = vmatpush1.msra.mxu0 0.0
      %986 = vmatprep.subr.mxu0 0.0
      %987 = vmatpush1.msra.mxu0 0.0
      %988 = vmatprep.subr.mxu0 0.0
      %989 = vmatpush1.msra.mxu0 0.0
      %990 = vmatprep.subr.mxu0 0.0
      %991 = vmatpush1.msra.mxu0 0.0
      %992 = vmatprep.subr.mxu0 0.0
      %993 = vmatpush1.msra.mxu0 0.0
      %994 = vmatprep.subr.mxu0 0.0
      %995 = vmatpush1.msra.mxu0 0.0
      %996 = vmatprep.subr.mxu0 0.0
      %997 = vmatpush1.msra.mxu0 0.0
      %998 = vmatprep.subr.mxu0 0.0
      %999 = vmatpush1.msra.mxu0 0.0
      %1000 = vmatprep.subr.mxu0 0.0
      %1001 = vmatpush1.msra.mxu0 0.0
      %1002 = vmatprep.mubr.f32.mxu0 0.0
      %1003 = vmatmul.mubr.f32.gmra.mrb[0].mxu0 %v934
      %v1004 = vpop.f32.mrb[0].mxu0
      %v1005 = vadd.f32 0.0, %v1004
      %v1006 = vpop.f32.mrb[0].mxu0
      %v1007 = vadd.f32 0.0, %v1006
      %1008 = vdwg.mxu0
      %1009 = vmatprep.subr.mxu0 %v256
      %1010 = vmatpush1.msra.mxu0 %v255
      %1011 = vmatprep.subr.mxu0 %v260
      %1012 = vmatpush1.msra.mxu0 %v259
      %1013 = vmatprep.subr.mxu0 %v264
      %1014 = vmatpush1.msra.mxu0 %v263
      %1015 = vmatprep.subr.mxu0 %v268
      %1016 = vmatpush1.msra.mxu0 %v267
      %1017 = vmatprep.subr.mxu0 %v272
      %1018 = vmatpush1.msra.mxu0 %v271
      %1019 = vmatprep.subr.mxu0 %v276
      %1020 = vmatpush1.msra.mxu0 %v275
      %1021 = vmatprep.subr.mxu0 %v280
      %1022 = vmatpush1.msra.mxu0 %v279
      %1023 = vmatprep.subr.mxu0 %v284
      %1024 = vmatpush1.msra.mxu0 %v283
      %1025 = vmatprep.subr.mxu0 %v288
      %1026 = vmatpush1.msra.mxu0 %v287
      %1027 = vmatprep.subr.mxu0 %v292
      %1028 = vmatpush1.msra.mxu0 %v291
      %1029 = vmatprep.subr.mxu0 %v296
      %1030 = vmatpush1.msra.mxu0 %v295
      %1031 = vmatprep.subr.mxu0 %v300
      %1032 = vmatpush1.msra.mxu0 %v299
      %1033 = vmatprep.subr.mxu0 %v304
      %1034 = vmatpush1.msra.mxu0 %v303
      %1035 = vmatprep.subr.mxu0 %v308
      %1036 = vmatpush1.msra.mxu0 %v307
      %1037 = vmatprep.subr.mxu0 %v312
      %1038 = vmatpush1.msra.mxu0 %v311
      %1039 = vmatprep.subr.mxu0 %v316
      %1040 = vmatpush1.msra.mxu0 %v315
      %1041 = vmatprep.subr.mxu0 0.0
      %1042 = vmatpush1.msra.mxu0 0.0
      %1043 = vmatprep.subr.mxu0 0.0
      %1044 = vmatpush1.msra.mxu0 0.0
      %1045 = vmatprep.subr.mxu0 0.0
      %1046 = vmatpush1.msra.mxu0 0.0
      %1047 = vmatprep.subr.mxu0 0.0
      %1048 = vmatpush1.msra.mxu0 0.0
      %1049 = vmatprep.subr.mxu0 0.0
      %1050 = vmatpush1.msra.mxu0 0.0
      %1051 = vmatprep.subr.mxu0 0.0
      %1052 = vmatpush1.msra.mxu0 0.0
      %1053 = vmatprep.subr.mxu0 0.0
      %1054 = vmatpush1.msra.mxu0 0.0
      %1055 = vmatprep.subr.mxu0 0.0
      %1056 = vmatpush1.msra.mxu0 0.0
      %1057 = vmatprep.subr.mxu0 0.0
      %1058 = vmatpush1.msra.mxu0 0.0
      %1059 = vmatprep.subr.mxu0 0.0
      %1060 = vmatpush1.msra.mxu0 0.0
      %1061 = vmatprep.subr.mxu0 0.0
      %1062 = vmatpush1.msra.mxu0 0.0
      %1063 = vmatprep.subr.mxu0 0.0
      %1064 = vmatpush1.msra.mxu0 0.0
      %1065 = vmatprep.subr.mxu0 0.0
      %1066 = vmatpush1.msra.mxu0 0.0
      %1067 = vmatprep.subr.mxu0 0.0
      %1068 = vmatpush1.msra.mxu0 0.0
      %1069 = vmatprep.subr.mxu0 0.0
      %1070 = vmatpush1.msra.mxu0 0.0
      %1071 = vmatprep.subr.mxu0 0.0
      %1072 = vmatpush1.msra.mxu0 0.0
      %1073 = vmatprep.mubr.f32.mxu0 0.0
      %1074 = vmatmul.mubr.f32.gmra.mrb[0].mxu0 %v934
      %v1075 = vpop.f32.mrb[0].mxu0
      %v1076 = vadd.f32 0.0, %v1075
      %v1077 = vpop.f32.mrb[0].mxu0
      %v1078 = vadd.f32 0.0, %v1077
      %1079 = vdwg.mxu0
      %v1084 = vcombine.low %v1005, %v1007
      %v1085 = vcombine.low %v1076, %v1078
      %v1087 = vunpack.c.l.s4 1966171168
      %v1088 = vunpack.c.0.s8 %v1087
      %v1089 = vlaneseq
      %v1090 = vshrl.u32 %v1089, 7
      %v1091 = vsub.s32 %v1088, %v1090
      %v1092 = vrot.slane %v1084, %v1091
      %v1094 = vunpack.c.l.s4 1966171168
      %v1095 = vunpack.c.0.s8 %v1094
      %v1096 = vlaneseq
      %v1097 = vshrl.u32 %v1096, 7
      %v1098 = vsub.s32 %v1095, %v1097
      %v1099 = vrot.slane %v1085, %v1098
      %v1100 = vcombine.low %v1092, %v1099
      %v1102 = vunpack.c.l.s4 1966171168
      %v1103 = vunpack.c.0.s8 %v1102
      %v1104 = vlaneseq
      %v1105 = vshrl.u32 %v1104, 7
      %v1106 = vsub.s32 %v1103, %v1105
      %v1107 = vrot.slane %v1100, %v1106
      %v1109 = vadd.f32 %v937, %v1107
      %v1110 = vxor.u32 %v1109, 2147483648
      %v1111 = vmul.f32 %v1110, 1.442695
      %v1112 = vpow.pop %v1111
      %v1113 = vadd.f32 %v1112, 1.0
      %v1114 = vrcp.pop %v1113
      %v1115 = vmul.f32 1.0, %v1114
      %v1117 = vrot.slane %v1109, 1
      %v1119 = vxor.u32 %v1117, 2147483648
      %v1120 = vmul.f32 %v1119, 1.442695
      %v1121 = vpow.pop %v1120
      %v1122 = vadd.f32 %v1121, 1.0
      %v1123 = vrcp.pop %v1122
      %v1124 = vmul.f32 1.0, %v1123
      %v1125 = vrot.slane %v1109, 2
      %v1127 = vtanh.pop %v1125
      %v1128 = vrot.slane %v1109, 3
      %v1130 = vxor.u32 %v1128, 2147483648
      %v1131 = vmul.f32 %v1130, 1.442695
      %v1132 = vpow.pop %v1131
      %v1133 = vadd.f32 %v1132, 1.0
      %v1134 = vrcp.pop %v1133
      %v1135 = vmul.f32 1.0, %v1134
      %v1136 = vmul.f32 %v1124, %v932
      %v1137 = vmul.f32 %v1115, %v1127
      %v1138 = vadd.f32 %v1136, %v1137
      %v1139 = vtanh.pop %v1138
      %v1140 = vmul.f32 %v1135, %v1139
      %1141 = vst [vmem:[%s240 + $0x3] sm:$0x1] %v1140
      %s1142 = scalar_lea.vmem %s233, 4
      %v1143 = vld [vmem:[%s1142] ss:$8 sm:$0xf]
      %1144 = vmatprep.subr.mxu0 %v254
      %1145 = vmatpush1.msra.mxu0 %v253
      %1146 = vmatprep.subr.mxu0 %v258
      %1147 = vmatpush1.msra.mxu0 %v257
      %1148 = vmatprep.subr.mxu0 %v262
      %1149 = vmatpush1.msra.mxu0 %v261
      %1150 = vmatprep.subr.mxu0 %v266
      %1151 = vmatpush1.msra.mxu0 %v265
      %1152 = vmatprep.subr.mxu0 %v270
      %1153 = vmatpush1.msra.mxu0 %v269
      %1154 = vmatprep.subr.mxu0 %v274
      %1155 = vmatpush1.msra.mxu0 %v273
      %1156 = vmatprep.subr.mxu0 %v278
      %1157 = vmatpush1.msra.mxu0 %v277
      %1158 = vmatprep.subr.mxu0 %v282
      %1159 = vmatpush1.msra.mxu0 %v281
      %1160 = vmatprep.subr.mxu0 %v286
      %1161 = vmatpush1.msra.mxu0 %v285
      %1162 = vmatprep.subr.mxu0 %v290
      %1163 = vmatpush1.msra.mxu0 %v289
      %1164 = vmatprep.subr.mxu0 %v294
      %1165 = vmatpush1.msra.mxu0 %v293
      %1166 = vmatprep.subr.mxu0 %v298
      %1167 = vmatpush1.msra.mxu0 %v297
      %1168 = vmatprep.subr.mxu0 %v302
      %1169 = vmatpush1.msra.mxu0 %v301
      %1170 = vmatprep.subr.mxu0 %v306
      %1171 = vmatpush1.msra.mxu0 %v305
      %1172 = vmatprep.subr.mxu0 %v310
      %1173 = vmatpush1.msra.mxu0 %v309
      %1174 = vmatprep.subr.mxu0 %v314
      %1175 = vmatpush1.msra.mxu0 %v313
      %1176 = vmatprep.subr.mxu0 0.0
      %1177 = vmatpush1.msra.mxu0 0.0
      %1178 = vmatprep.subr.mxu0 0.0
      %1179 = vmatpush1.msra.mxu0 0.0
      %1180 = vmatprep.subr.mxu0 0.0
      %1181 = vmatpush1.msra.mxu0 0.0
      %1182 = vmatprep.subr.mxu0 0.0
      %1183 = vmatpush1.msra.mxu0 0.0
      %1184 = vmatprep.subr.mxu0 0.0
      %1185 = vmatpush1.msra.mxu0 0.0
      %1186 = vmatprep.subr.mxu0 0.0
      %1187 = vmatpush1.msra.mxu0 0.0
      %1188 = vmatprep.subr.mxu0 0.0
      %1189 = vmatpush1.msra.mxu0 0.0
      %1190 = vmatprep.subr.mxu0 0.0
      %1191 = vmatpush1.msra.mxu0 0.0
      %1192 = vmatprep.subr.mxu0 0.0
      %1193 = vmatpush1.msra.mxu0 0.0
      %1194 = vmatprep.subr.mxu0 0.0
      %1195 = vmatpush1.msra.mxu0 0.0
      %1196 = vmatprep.subr.mxu0 0.0
      %1197 = vmatpush1.msra.mxu0 0.0
      %1198 = vmatprep.subr.mxu0 0.0
      %1199 = vmatpush1.msra.mxu0 0.0
      %1200 = vmatprep.subr.mxu0 0.0
      %1201 = vmatpush1.msra.mxu0 0.0
      %1202 = vmatprep.subr.mxu0 0.0
      %1203 = vmatpush1.msra.mxu0 0.0
      %1204 = vmatprep.subr.mxu0 0.0
      %1205 = vmatpush1.msra.mxu0 0.0
      %1206 = vmatprep.subr.mxu0 0.0
      %1207 = vmatpush1.msra.mxu0 0.0
      %1208 = vmatprep.mubr.f32.mxu0 0.0
      %1209 = vmatmul.mubr.f32.gmra.mrb[0].mxu0 %v1140
      %v1210 = vpop.f32.mrb[0].mxu0
      %v1211 = vadd.f32 0.0, %v1210
      %v1212 = vpop.f32.mrb[0].mxu0
      %v1213 = vadd.f32 0.0, %v1212
      %1214 = vdwg.mxu0
      %1215 = vmatprep.subr.mxu0 %v256
      %1216 = vmatpush1.msra.mxu0 %v255
      %1217 = vmatprep.subr.mxu0 %v260
      %1218 = vmatpush1.msra.mxu0 %v259
      %1219 = vmatprep.subr.mxu0 %v264
      %1220 = vmatpush1.msra.mxu0 %v263
      %1221 = vmatprep.subr.mxu0 %v268
      %1222 = vmatpush1.msra.mxu0 %v267
      %1223 = vmatprep.subr.mxu0 %v272
      %1224 = vmatpush1.msra.mxu0 %v271
      %1225 = vmatprep.subr.mxu0 %v276
      %1226 = vmatpush1.msra.mxu0 %v275
      %1227 = vmatprep.subr.mxu0 %v280
      %1228 = vmatpush1.msra.mxu0 %v279
      %1229 = vmatprep.subr.mxu0 %v284
      %1230 = vmatpush1.msra.mxu0 %v283
      %1231 = vmatprep.subr.mxu0 %v288
      %1232 = vmatpush1.msra.mxu0 %v287
      %1233 = vmatprep.subr.mxu0 %v292
      %1234 = vmatpush1.msra.mxu0 %v291
      %1235 = vmatprep.subr.mxu0 %v296
      %1236 = vmatpush1.msra.mxu0 %v295
      %1237 = vmatprep.subr.mxu0 %v300
      %1238 = vmatpush1.msra.mxu0 %v299
      %1239 = vmatprep.subr.mxu0 %v304
      %1240 = vmatpush1.msra.mxu0 %v303
      %1241 = vmatprep.subr.mxu0 %v308
      %1242 = vmatpush1.msra.mxu0 %v307
      %1243 = vmatprep.subr.mxu0 %v312
      %1244 = vmatpush1.msra.mxu0 %v311
      %1245 = vmatprep.subr.mxu0 %v316
      %1246 = vmatpush1.msra.mxu0 %v315
      %1247 = vmatprep.subr.mxu0 0.0
      %1248 = vmatpush1.msra.mxu0 0.0
      %1249 = vmatprep.subr.mxu0 0.0
      %1250 = vmatpush1.msra.mxu0 0.0
      %1251 = vmatprep.subr.mxu0 0.0
      %1252 = vmatpush1.msra.mxu0 0.0
      %1253 = vmatprep.subr.mxu0 0.0
      %1254 = vmatpush1.msra.mxu0 0.0
      %1255 = vmatprep.subr.mxu0 0.0
      %1256 = vmatpush1.msra.mxu0 0.0
      %1257 = vmatprep.subr.mxu0 0.0
      %1258 = vmatpush1.msra.mxu0 0.0
      %1259 = vmatprep.subr.mxu0 0.0
      %1260 = vmatpush1.msra.mxu0 0.0
      %1261 = vmatprep.subr.mxu0 0.0
      %1262 = vmatpush1.msra.mxu0 0.0
      %1263 = vmatprep.subr.mxu0 0.0
      %1264 = vmatpush1.msra.mxu0 0.0
      %1265 = vmatprep.subr.mxu0 0.0
      %1266 = vmatpush1.msra.mxu0 0.0
      %1267 = vmatprep.subr.mxu0 0.0
      %1268 = vmatpush1.msra.mxu0 0.0
      %1269 = vmatprep.subr.mxu0 0.0
      %1270 = vmatpush1.msra.mxu0 0.0
      %1271 = vmatprep.subr.mxu0 0.0
      %1272 = vmatpush1.msra.mxu0 0.0
      %1273 = vmatprep.subr.mxu0 0.0
      %1274 = vmatpush1.msra.mxu0 0.0
      %1275 = vmatprep.subr.mxu0 0.0
      %1276 = vmatpush1.msra.mxu0 0.0
      %1277 = vmatprep.subr.mxu0 0.0
      %1278 = vmatpush1.msra.mxu0 0.0
      %1279 = vmatprep.mubr.f32.mxu0 0.0
      %1280 = vmatmul.mubr.f32.gmra.mrb[0].mxu0 %v1140
      %v1281 = vpop.f32.mrb[0].mxu0
      %v1282 = vadd.f32 0.0, %v1281
      %v1283 = vpop.f32.mrb[0].mxu0
      %v1284 = vadd.f32 0.0, %v1283
      %1285 = vdwg.mxu0
      %v1290 = vcombine.low %v1211, %v1213
      %v1291 = vcombine.low %v1282, %v1284
      %v1293 = vunpack.c.l.s4 1966171168
      %v1294 = vunpack.c.0.s8 %v1293
      %v1295 = vlaneseq
      %v1296 = vshrl.u32 %v1295, 7
      %v1297 = vsub.s32 %v1294, %v1296
      %v1298 = vrot.slane %v1290, %v1297
      %v1300 = vunpack.c.l.s4 1966171168
      %v1301 = vunpack.c.0.s8 %v1300
      %v1302 = vlaneseq
      %v1303 = vshrl.u32 %v1302, 7
      %v1304 = vsub.s32 %v1301, %v1303
      %v1305 = vrot.slane %v1291, %v1304
      %v1306 = vcombine.low %v1298, %v1305
      %v1308 = vunpack.c.l.s4 1966171168
      %v1309 = vunpack.c.0.s8 %v1308
      %v1310 = vlaneseq
      %v1311 = vshrl.u32 %v1310, 7
      %v1312 = vsub.s32 %v1309, %v1311
      %v1313 = vrot.slane %v1306, %v1312
      %v1315 = vadd.f32 %v1143, %v1313
      %v1316 = vxor.u32 %v1315, 2147483648
      %v1317 = vmul.f32 %v1316, 1.442695
      %v1318 = vpow.pop %v1317
      %v1319 = vadd.f32 %v1318, 1.0
      %v1320 = vrcp.pop %v1319
      %v1321 = vmul.f32 1.0, %v1320
      %v1323 = vrot.slane %v1315, 1
      %v1325 = vxor.u32 %v1323, 2147483648
      %v1326 = vmul.f32 %v1325, 1.442695
      %v1327 = vpow.pop %v1326
      %v1328 = vadd.f32 %v1327, 1.0
      %v1329 = vrcp.pop %v1328
      %v1330 = vmul.f32 1.0, %v1329
      %v1331 = vrot.slane %v1315, 2
      %v1333 = vtanh.pop %v1331
      %v1334 = vrot.slane %v1315, 3
      %v1336 = vxor.u32 %v1334, 2147483648
      %v1337 = vmul.f32 %v1336, 1.442695
      %v1338 = vpow.pop %v1337
      %v1339 = vadd.f32 %v1338, 1.0
      %v1340 = vrcp.pop %v1339
      %v1341 = vmul.f32 1.0, %v1340
      %v1342 = vmul.f32 %v1330, %v1138
      %v1343 = vmul.f32 %v1321, %v1333
      %v1344 = vadd.f32 %v1342, %v1343
      %v1345 = vtanh.pop %v1344
      %v1346 = vmul.f32 %v1341, %v1345
      %1347 = vst [vmem:[%s240 + $0x4] sm:$0x1] %v1346
      %s1348 = scalar_lea.vmem %s233, 5
      %v1349 = vld [vmem:[%s1348] ss:$8 sm:$0xf]
      %1350 = vmatprep.subr.mxu0 %v254
      %1351 = vmatpush1.msra.mxu0 %v253
      %1352 = vmatprep.subr.mxu0 %v258
      %1353 = vmatpush1.msra.mxu0 %v257
      %1354 = vmatprep.subr.mxu0 %v262
      %1355 = vmatpush1.msra.mxu0 %v261
      %1356 = vmatprep.subr.mxu0 %v266
      %1357 = vmatpush1.msra.mxu0 %v265
      %1358 = vmatprep.subr.mxu0 %v270
      %1359 = vmatpush1.msra.mxu0 %v269
      %1360 = vmatprep.subr.mxu0 %v274
      %1361 = vmatpush1.msra.mxu0 %v273
      %1362 = vmatprep.subr.mxu0 %v278
      %1363 = vmatpush1.msra.mxu0 %v277
      %1364 = vmatprep.subr.mxu0 %v282
      %1365 = vmatpush1.msra.mxu0 %v281
      %1366 = vmatprep.subr.mxu0 %v286
      %1367 = vmatpush1.msra.mxu0 %v285
      %1368 = vmatprep.subr.mxu0 %v290
      %1369 = vmatpush1.msra.mxu0 %v289
      %1370 = vmatprep.subr.mxu0 %v294
      %1371 = vmatpush1.msra.mxu0 %v293
      %1372 = vmatprep.subr.mxu0 %v298
      %1373 = vmatpush1.msra.mxu0 %v297
      %1374 = vmatprep.subr.mxu0 %v302
      %1375 = vmatpush1.msra.mxu0 %v301
      %1376 = vmatprep.subr.mxu0 %v306
      %1377 = vmatpush1.msra.mxu0 %v305
      %1378 = vmatprep.subr.mxu0 %v310
      %1379 = vmatpush1.msra.mxu0 %v309
      %1380 = vmatprep.subr.mxu0 %v314
      %1381 = vmatpush1.msra.mxu0 %v313
      %1382 = vmatprep.subr.mxu0 0.0
      %1383 = vmatpush1.msra.mxu0 0.0
      %1384 = vmatprep.subr.mxu0 0.0
      %1385 = vmatpush1.msra.mxu0 0.0
      %1386 = vmatprep.subr.mxu0 0.0
      %1387 = vmatpush1.msra.mxu0 0.0
      %1388 = vmatprep.subr.mxu0 0.0
      %1389 = vmatpush1.msra.mxu0 0.0
      %1390 = vmatprep.subr.mxu0 0.0
      %1391 = vmatpush1.msra.mxu0 0.0
      %1392 = vmatprep.subr.mxu0 0.0
      %1393 = vmatpush1.msra.mxu0 0.0
      %1394 = vmatprep.subr.mxu0 0.0
      %1395 = vmatpush1.msra.mxu0 0.0
      %1396 = vmatprep.subr.mxu0 0.0
      %1397 = vmatpush1.msra.mxu0 0.0
      %1398 = vmatprep.subr.mxu0 0.0
      %1399 = vmatpush1.msra.mxu0 0.0
      %1400 = vmatprep.subr.mxu0 0.0
      %1401 = vmatpush1.msra.mxu0 0.0
      %1402 = vmatprep.subr.mxu0 0.0
      %1403 = vmatpush1.msra.mxu0 0.0
      %1404 = vmatprep.subr.mxu0 0.0
      %1405 = vmatpush1.msra.mxu0 0.0
      %1406 = vmatprep.subr.mxu0 0.0
      %1407 = vmatpush1.msra.mxu0 0.0
      %1408 = vmatprep.subr.mxu0 0.0
      %1409 = vmatpush1.msra.mxu0 0.0
      %1410 = vmatprep.subr.mxu0 0.0
      %1411 = vmatpush1.msra.mxu0 0.0
      %1412 = vmatprep.subr.mxu0 0.0
      %1413 = vmatpush1.msra.mxu0 0.0
      %1414 = vmatprep.mubr.f32.mxu0 0.0
      %1415 = vmatmul.mubr.f32.gmra.mrb[0].mxu0 %v1346
      %v1416 = vpop.f32.mrb[0].mxu0
      %v1417 = vadd.f32 0.0, %v1416
      %v1418 = vpop.f32.mrb[0].mxu0
      %v1419 = vadd.f32 0.0, %v1418
      %1420 = vdwg.mxu0
      %1421 = vmatprep.subr.mxu0 %v256
      %1422 = vmatpush1.msra.mxu0 %v255
      %1423 = vmatprep.subr.mxu0 %v260
      %1424 = vmatpush1.msra.mxu0 %v259
      %1425 = vmatprep.subr.mxu0 %v264
      %1426 = vmatpush1.msra.mxu0 %v263
      %1427 = vmatprep.subr.mxu0 %v268
      %1428 = vmatpush1.msra.mxu0 %v267
      %1429 = vmatprep.subr.mxu0 %v272
      %1430 = vmatpush1.msra.mxu0 %v271
      %1431 = vmatprep.subr.mxu0 %v276
      %1432 = vmatpush1.msra.mxu0 %v275
      %1433 = vmatprep.subr.mxu0 %v280
      %1434 = vmatpush1.msra.mxu0 %v279
      %1435 = vmatprep.subr.mxu0 %v284
      %1436 = vmatpush1.msra.mxu0 %v283
      %1437 = vmatprep.subr.mxu0 %v288
      %1438 = vmatpush1.msra.mxu0 %v287
      %1439 = vmatprep.subr.mxu0 %v292
      %1440 = vmatpush1.msra.mxu0 %v291
      %1441 = vmatprep.subr.mxu0 %v296
      %1442 = vmatpush1.msra.mxu0 %v295
      %1443 = vmatprep.subr.mxu0 %v300
      %1444 = vmatpush1.msra.mxu0 %v299
      %1445 = vmatprep.subr.mxu0 %v304
      %1446 = vmatpush1.msra.mxu0 %v303
      %1447 = vmatprep.subr.mxu0 %v308
      %1448 = vmatpush1.msra.mxu0 %v307
      %1449 = vmatprep.subr.mxu0 %v312
      %1450 = vmatpush1.msra.mxu0 %v311
      %1451 = vmatprep.subr.mxu0 %v316
      %1452 = vmatpush1.msra.mxu0 %v315
      %1453 = vmatprep.subr.mxu0 0.0
      %1454 = vmatpush1.msra.mxu0 0.0
      %1455 = vmatprep.subr.mxu0 0.0
      %1456 = vmatpush1.msra.mxu0 0.0
      %1457 = vmatprep.subr.mxu0 0.0
      %1458 = vmatpush1.msra.mxu0 0.0
      %1459 = vmatprep.subr.mxu0 0.0
      %1460 = vmatpush1.msra.mxu0 0.0
      %1461 = vmatprep.subr.mxu0 0.0
      %1462 = vmatpush1.msra.mxu0 0.0
      %1463 = vmatprep.subr.mxu0 0.0
      %1464 = vmatpush1.msra.mxu0 0.0
      %1465 = vmatprep.subr.mxu0 0.0
      %1466 = vmatpush1.msra.mxu0 0.0
      %1467 = vmatprep.subr.mxu0 0.0
      %1468 = vmatpush1.msra.mxu0 0.0
      %1469 = vmatprep.subr.mxu0 0.0
      %1470 = vmatpush1.msra.mxu0 0.0
      %1471 = vmatprep.subr.mxu0 0.0
      %1472 = vmatpush1.msra.mxu0 0.0
      %1473 = vmatprep.subr.mxu0 0.0
      %1474 = vmatpush1.msra.mxu0 0.0
      %1475 = vmatprep.subr.mxu0 0.0
      %1476 = vmatpush1.msra.mxu0 0.0
      %1477 = vmatprep.subr.mxu0 0.0
      %1478 = vmatpush1.msra.mxu0 0.0
      %1479 = vmatprep.subr.mxu0 0.0
      %1480 = vmatpush1.msra.mxu0 0.0
      %1481 = vmatprep.subr.mxu0 0.0
      %1482 = vmatpush1.msra.mxu0 0.0
      %1483 = vmatprep.subr.mxu0 0.0
      %1484 = vmatpush1.msra.mxu0 0.0
      %1485 = vmatprep.mubr.f32.mxu0 0.0
      %1486 = vmatmul.mubr.f32.gmra.mrb[0].mxu0 %v1346
      %v1487 = vpop.f32.mrb[0].mxu0
      %v1488 = vadd.f32 0.0, %v1487
      %v1489 = vpop.f32.mrb[0].mxu0
      %v1490 = vadd.f32 0.0, %v1489
      %1491 = vdwg.mxu0
      %v1496 = vcombine.low %v1417, %v1419
      %v1497 = vcombine.low %v1488, %v1490
      %v1499 = vunpack.c.l.s4 1966171168
      %v1500 = vunpack.c.0.s8 %v1499
      %v1501 = vlaneseq
      %v1502 = vshrl.u32 %v1501, 7
      %v1503 = vsub.s32 %v1500, %v1502
      %v1504 = vrot.slane %v1496, %v1503
      %v1506 = vunpack.c.l.s4 1966171168
      %v1507 = vunpack.c.0.s8 %v1506
      %v1508 = vlaneseq
      %v1509 = vshrl.u32 %v1508, 7
      %v1510 = vsub.s32 %v1507, %v1509
      %v1511 = vrot.slane %v1497, %v1510
      %v1512 = vcombine.low %v1504, %v1511
      %v1514 = vunpack.c.l.s4 1966171168
      %v1515 = vunpack.c.0.s8 %v1514
      %v1516 = vlaneseq
      %v1517 = vshrl.u32 %v1516, 7
      %v1518 = vsub.s32 %v1515, %v1517
      %v1519 = vrot.slane %v1512, %v1518
      %v1521 = vadd.f32 %v1349, %v1519
      %v1522 = vxor.u32 %v1521, 2147483648
      %v1523 = vmul.f32 %v1522, 1.442695
      %v1524 = vpow.pop %v1523
      %v1525 = vadd.f32 %v1524, 1.0
      %v1526 = vrcp.pop %v1525
      %v1527 = vmul.f32 1.0, %v1526
      %v1529 = vrot.slane %v1521, 1
      %v1531 = vxor.u32 %v1529, 2147483648
      %v1532 = vmul.f32 %v1531, 1.442695
      %v1533 = vpow.pop %v1532
      %v1534 = vadd.f32 %v1533, 1.0
      %v1535 = vrcp.pop %v1534
      %v1536 = vmul.f32 1.0, %v1535
      %v1537 = vrot.slane %v1521, 2
      %v1539 = vtanh.pop %v1537
      %v1540 = vrot.slane %v1521, 3
      %v1542 = vxor.u32 %v1540, 2147483648
      %v1543 = vmul.f32 %v1542, 1.442695
      %v1544 = vpow.pop %v1543
      %v1545 = vadd.f32 %v1544, 1.0
      %v1546 = vrcp.pop %v1545
      %v1547 = vmul.f32 1.0, %v1546
      %v1548 = vmul.f32 %v1536, %v1344
      %v1549 = vmul.f32 %v1527, %v1539
      %v1550 = vadd.f32 %v1548, %v1549
      %v1551 = vtanh.pop %v1550
      %v1552 = vmul.f32 %v1547, %v1551
      %1553 = vst [vmem:[%s240 + $0x5] sm:$0x1] %v1552
      %s1554 = scalar_lea.vmem %s233, 6
      %v1555 = vld [vmem:[%s1554] ss:$8 sm:$0xf]
      %1556 = vmatprep.subr.mxu0 %v254
      %1557 = vmatpush1.msra.mxu0 %v253
      %1558 = vmatprep.subr.mxu0 %v258
      %1559 = vmatpush1.msra.mxu0 %v257
      %1560 = vmatprep.subr.mxu0 %v262
      %1561 = vmatpush1.msra.mxu0 %v261
      %1562 = vmatprep.subr.mxu0 %v266
      %1563 = vmatpush1.msra.mxu0 %v265
      %1564 = vmatprep.subr.mxu0 %v270
      %1565 = vmatpush1.msra.mxu0 %v269
      %1566 = vmatprep.subr.mxu0 %v274
      %1567 = vmatpush1.msra.mxu0 %v273
      %1568 = vmatprep.subr.mxu0 %v278
      %1569 = vmatpush1.msra.mxu0 %v277
      %1570 = vmatprep.subr.mxu0 %v282
      %1571 = vmatpush1.msra.mxu0 %v281
      %1572 = vmatprep.subr.mxu0 %v286
      %1573 = vmatpush1.msra.mxu0 %v285
      %1574 = vmatprep.subr.mxu0 %v290
      %1575 = vmatpush1.msra.mxu0 %v289
      %1576 = vmatprep.subr.mxu0 %v294
      %1577 = vmatpush1.msra.mxu0 %v293
      %1578 = vmatprep.subr.mxu0 %v298
      %1579 = vmatpush1.msra.mxu0 %v297
      %1580 = vmatprep.subr.mxu0 %v302
      %1581 = vmatpush1.msra.mxu0 %v301
      %1582 = vmatprep.subr.mxu0 %v306
      %1583 = vmatpush1.msra.mxu0 %v305
      %1584 = vmatprep.subr.mxu0 %v310
      %1585 = vmatpush1.msra.mxu0 %v309
      %1586 = vmatprep.subr.mxu0 %v314
      %1587 = vmatpush1.msra.mxu0 %v313
      %1588 = vmatprep.subr.mxu0 0.0
      %1589 = vmatpush1.msra.mxu0 0.0
      %1590 = vmatprep.subr.mxu0 0.0
      %1591 = vmatpush1.msra.mxu0 0.0
      %1592 = vmatprep.subr.mxu0 0.0
      %1593 = vmatpush1.msra.mxu0 0.0
      %1594 = vmatprep.subr.mxu0 0.0
      %1595 = vmatpush1.msra.mxu0 0.0
      %1596 = vmatprep.subr.mxu0 0.0
      %1597 = vmatpush1.msra.mxu0 0.0
      %1598 = vmatprep.subr.mxu0 0.0
      %1599 = vmatpush1.msra.mxu0 0.0
      %1600 = vmatprep.subr.mxu0 0.0
      %1601 = vmatpush1.msra.mxu0 0.0
      %1602 = vmatprep.subr.mxu0 0.0
      %1603 = vmatpush1.msra.mxu0 0.0
      %1604 = vmatprep.subr.mxu0 0.0
      %1605 = vmatpush1.msra.mxu0 0.0
      %1606 = vmatprep.subr.mxu0 0.0
      %1607 = vmatpush1.msra.mxu0 0.0
      %1608 = vmatprep.subr.mxu0 0.0
      %1609 = vmatpush1.msra.mxu0 0.0
      %1610 = vmatprep.subr.mxu0 0.0
      %1611 = vmatpush1.msra.mxu0 0.0
      %1612 = vmatprep.subr.mxu0 0.0
      %1613 = vmatpush1.msra.mxu0 0.0
      %1614 = vmatprep.subr.mxu0 0.0
      %1615 = vmatpush1.msra.mxu0 0.0
      %1616 = vmatprep.subr.mxu0 0.0
      %1617 = vmatpush1.msra.mxu0 0.0
      %1618 = vmatprep.subr.mxu0 0.0
      %1619 = vmatpush1.msra.mxu0 0.0
      %1620 = vmatprep.mubr.f32.mxu0 0.0
      %1621 = vmatmul.mubr.f32.gmra.mrb[0].mxu0 %v1552
      %v1622 = vpop.f32.mrb[0].mxu0
      %v1623 = vadd.f32 0.0, %v1622
      %v1624 = vpop.f32.mrb[0].mxu0
      %v1625 = vadd.f32 0.0, %v1624
      %1626 = vdwg.mxu0
      %1627 = vmatprep.subr.mxu0 %v256
      %1628 = vmatpush1.msra.mxu0 %v255
      %1629 = vmatprep.subr.mxu0 %v260
      %1630 = vmatpush1.msra.mxu0 %v259
      %1631 = vmatprep.subr.mxu0 %v264
      %1632 = vmatpush1.msra.mxu0 %v263
      %1633 = vmatprep.subr.mxu0 %v268
      %1634 = vmatpush1.msra.mxu0 %v267
      %1635 = vmatprep.subr.mxu0 %v272
      %1636 = vmatpush1.msra.mxu0 %v271
      %1637 = vmatprep.subr.mxu0 %v276
      %1638 = vmatpush1.msra.mxu0 %v275
      %1639 = vmatprep.subr.mxu0 %v280
      %1640 = vmatpush1.msra.mxu0 %v279
      %1641 = vmatprep.subr.mxu0 %v284
      %1642 = vmatpush1.msra.mxu0 %v283
      %1643 = vmatprep.subr.mxu0 %v288
      %1644 = vmatpush1.msra.mxu0 %v287
      %1645 = vmatprep.subr.mxu0 %v292
      %1646 = vmatpush1.msra.mxu0 %v291
      %1647 = vmatprep.subr.mxu0 %v296
      %1648 = vmatpush1.msra.mxu0 %v295
      %1649 = vmatprep.subr.mxu0 %v300
      %1650 = vmatpush1.msra.mxu0 %v299
      %1651 = vmatprep.subr.mxu0 %v304
      %1652 = vmatpush1.msra.mxu0 %v303
      %1653 = vmatprep.subr.mxu0 %v308
      %1654 = vmatpush1.msra.mxu0 %v307
      %1655 = vmatprep.subr.mxu0 %v312
      %1656 = vmatpush1.msra.mxu0 %v311
      %1657 = vmatprep.subr.mxu0 %v316
      %1658 = vmatpush1.msra.mxu0 %v315
      %1659 = vmatprep.subr.mxu0 0.0
      %1660 = vmatpush1.msra.mxu0 0.0
      %1661 = vmatprep.subr.mxu0 0.0
      %1662 = vmatpush1.msra.mxu0 0.0
      %1663 = vmatprep.subr.mxu0 0.0
      %1664 = vmatpush1.msra.mxu0 0.0
      %1665 = vmatprep.subr.mxu0 0.0
      %1666 = vmatpush1.msra.mxu0 0.0
      %1667 = vmatprep.subr.mxu0 0.0
      %1668 = vmatpush1.msra.mxu0 0.0
      %1669 = vmatprep.subr.mxu0 0.0
      %1670 = vmatpush1.msra.mxu0 0.0
      %1671 = vmatprep.subr.mxu0 0.0
      %1672 = vmatpush1.msra.mxu0 0.0
      %1673 = vmatprep.subr.mxu0 0.0
      %1674 = vmatpush1.msra.mxu0 0.0
      %1675 = vmatprep.subr.mxu0 0.0
      %1676 = vmatpush1.msra.mxu0 0.0
      %1677 = vmatprep.subr.mxu0 0.0
      %1678 = vmatpush1.msra.mxu0 0.0
      %1679 = vmatprep.subr.mxu0 0.0
      %1680 = vmatpush1.msra.mxu0 0.0
      %1681 = vmatprep.subr.mxu0 0.0
      %1682 = vmatpush1.msra.mxu0 0.0
      %1683 = vmatprep.subr.mxu0 0.0
      %1684 = vmatpush1.msra.mxu0 0.0
      %1685 = vmatprep.subr.mxu0 0.0
      %1686 = vmatpush1.msra.mxu0 0.0
      %1687 = vmatprep.subr.mxu0 0.0
      %1688 = vmatpush1.msra.mxu0 0.0
      %1689 = vmatprep.subr.mxu0 0.0
      %1690 = vmatpush1.msra.mxu0 0.0
      %1691 = vmatprep.mubr.f32.mxu0 0.0
      %1692 = vmatmul.mubr.f32.gmra.mrb[0].mxu0 %v1552
      %v1693 = vpop.f32.mrb[0].mxu0
      %v1694 = vadd.f32 0.0, %v1693
      %v1695 = vpop.f32.mrb[0].mxu0
      %v1696 = vadd.f32 0.0, %v1695
      %1697 = vdwg.mxu0
      %v1702 = vcombine.low %v1623, %v1625
      %v1703 = vcombine.low %v1694, %v1696
      %v1705 = vunpack.c.l.s4 1966171168
      %v1706 = vunpack.c.0.s8 %v1705
      %v1707 = vlaneseq
      %v1708 = vshrl.u32 %v1707, 7
      %v1709 = vsub.s32 %v1706, %v1708
      %v1710 = vrot.slane %v1702, %v1709
      %v1712 = vunpack.c.l.s4 1966171168
      %v1713 = vunpack.c.0.s8 %v1712
      %v1714 = vlaneseq
      %v1715 = vshrl.u32 %v1714, 7
      %v1716 = vsub.s32 %v1713, %v1715
      %v1717 = vrot.slane %v1703, %v1716
      %v1718 = vcombine.low %v1710, %v1717
      %v1720 = vunpack.c.l.s4 1966171168
      %v1721 = vunpack.c.0.s8 %v1720
      %v1722 = vlaneseq
      %v1723 = vshrl.u32 %v1722, 7
      %v1724 = vsub.s32 %v1721, %v1723
      %v1725 = vrot.slane %v1718, %v1724
      %v1727 = vadd.f32 %v1555, %v1725
      %v1728 = vxor.u32 %v1727, 2147483648
      %v1729 = vmul.f32 %v1728, 1.442695
      %v1730 = vpow.pop %v1729
      %v1731 = vadd.f32 %v1730, 1.0
      %v1732 = vrcp.pop %v1731
      %v1733 = vmul.f32 1.0, %v1732
      %v1735 = vrot.slane %v1727, 1
      %v1737 = vxor.u32 %v1735, 2147483648
      %v1738 = vmul.f32 %v1737, 1.442695
      %v1739 = vpow.pop %v1738
      %v1740 = vadd.f32 %v1739, 1.0
      %v1741 = vrcp.pop %v1740
      %v1742 = vmul.f32 1.0, %v1741
      %v1743 = vrot.slane %v1727, 2
      %v1745 = vtanh.pop %v1743
      %v1746 = vrot.slane %v1727, 3
      %v1748 = vxor.u32 %v1746, 2147483648
      %v1749 = vmul.f32 %v1748, 1.442695
      %v1750 = vpow.pop %v1749
      %v1751 = vadd.f32 %v1750, 1.0
      %v1752 = vrcp.pop %v1751
      %v1753 = vmul.f32 1.0, %v1752
      %v1754 = vmul.f32 %v1742, %v1550
      %v1755 = vmul.f32 %v1733, %v1745
      %v1756 = vadd.f32 %v1754, %v1755
      %v1757 = vtanh.pop %v1756
      %v1758 = vmul.f32 %v1753, %v1757
      %1759 = vst [vmem:[%s240 + $0x6] sm:$0x1] %v1758
      %s1760 = scalar_lea.vmem %s233, 7
      %v1761 = vld [vmem:[%s1760] ss:$8 sm:$0xf]
      %1762 = vmatprep.subr.mxu0 %v254
      %1763 = vmatpush1.msra.mxu0 %v253
      %1764 = vmatprep.subr.mxu0 %v258
      %1765 = vmatpush1.msra.mxu0 %v257
      %1766 = vmatprep.subr.mxu0 %v262
      %1767 = vmatpush1.msra.mxu0 %v261
      %1768 = vmatprep.subr.mxu0 %v266
      %1769 = vmatpush1.msra.mxu0 %v265
      %1770 = vmatprep.subr.mxu0 %v270
      %1771 = vmatpush1.msra.mxu0 %v269
      %1772 = vmatprep.subr.mxu0 %v274
      %1773 = vmatpush1.msra.mxu0 %v273
      %1774 = vmatprep.subr.mxu0 %v278
      %1775 = vmatpush1.msra.mxu0 %v277
      %1776 = vmatprep.subr.mxu0 %v282
      %1777 = vmatpush1.msra.mxu0 %v281
      %1778 = vmatprep.subr.mxu0 %v286
      %1779 = vmatpush1.msra.mxu0 %v285
      %1780 = vmatprep.subr.mxu0 %v290
      %1781 = vmatpush1.msra.mxu0 %v289
      %1782 = vmatprep.subr.mxu0 %v294
      %1783 = vmatpush1.msra.mxu0 %v293
      %1784 = vmatprep.subr.mxu0 %v298
      %1785 = vmatpush1.msra.mxu0 %v297
      %1786 = vmatprep.subr.mxu0 %v302
      %1787 = vmatpush1.msra.mxu0 %v301
      %1788 = vmatprep.subr.mxu0 %v306
      %1789 = vmatpush1.msra.mxu0 %v305
      %1790 = vmatprep.subr.mxu0 %v310
      %1791 = vmatpush1.msra.mxu0 %v309
      %1792 = vmatprep.subr.mxu0 %v314
      %1793 = vmatpush1.msra.mxu0 %v313
      %1794 = vmatprep.subr.mxu0 0.0
      %1795 = vmatpush1.msra.mxu0 0.0
      %1796 = vmatprep.subr.mxu0 0.0
      %1797 = vmatpush1.msra.mxu0 0.0
      %1798 = vmatprep.subr.mxu0 0.0
      %1799 = vmatpush1.msra.mxu0 0.0
      %1800 = vmatprep.subr.mxu0 0.0
      %1801 = vmatpush1.msra.mxu0 0.0
      %1802 = vmatprep.subr.mxu0 0.0
      %1803 = vmatpush1.msra.mxu0 0.0
      %1804 = vmatprep.subr.mxu0 0.0
      %1805 = vmatpush1.msra.mxu0 0.0
      %1806 = vmatprep.subr.mxu0 0.0
      %1807 = vmatpush1.msra.mxu0 0.0
      %1808 = vmatprep.subr.mxu0 0.0
      %1809 = vmatpush1.msra.mxu0 0.0
      %1810 = vmatprep.subr.mxu0 0.0
      %1811 = vmatpush1.msra.mxu0 0.0
      %1812 = vmatprep.subr.mxu0 0.0
      %1813 = vmatpush1.msra.mxu0 0.0
      %1814 = vmatprep.subr.mxu0 0.0
      %1815 = vmatpush1.msra.mxu0 0.0
      %1816 = vmatprep.subr.mxu0 0.0
      %1817 = vmatpush1.msra.mxu0 0.0
      %1818 = vmatprep.subr.mxu0 0.0
      %1819 = vmatpush1.msra.mxu0 0.0
      %1820 = vmatprep.subr.mxu0 0.0
      %1821 = vmatpush1.msra.mxu0 0.0
      %1822 = vmatprep.subr.mxu0 0.0
      %1823 = vmatpush1.msra.mxu0 0.0
      %1824 = vmatprep.subr.mxu0 0.0
      %1825 = vmatpush1.msra.mxu0 0.0
      %1826 = vmatprep.mubr.f32.mxu0 0.0
      %1827 = vmatmul.mubr.f32.gmra.mrb[0].mxu0 %v1758
      %v1828 = vpop.f32.mrb[0].mxu0
      %v1829 = vadd.f32 0.0, %v1828
      %v1830 = vpop.f32.mrb[0].mxu0
      %v1831 = vadd.f32 0.0, %v1830
      %1832 = vdwg.mxu0
      %1833 = vmatprep.subr.mxu0 %v256
      %1834 = vmatpush1.msra.mxu0 %v255
      %1835 = vmatprep.subr.mxu0 %v260
      %1836 = vmatpush1.msra.mxu0 %v259
      %1837 = vmatprep.subr.mxu0 %v264
      %1838 = vmatpush1.msra.mxu0 %v263
      %1839 = vmatprep.subr.mxu0 %v268
      %1840 = vmatpush1.msra.mxu0 %v267
      %1841 = vmatprep.subr.mxu0 %v272
      %1842 = vmatpush1.msra.mxu0 %v271
      %1843 = vmatprep.subr.mxu0 %v276
      %1844 = vmatpush1.msra.mxu0 %v275
      %1845 = vmatprep.subr.mxu0 %v280
      %1846 = vmatpush1.msra.mxu0 %v279
      %1847 = vmatprep.subr.mxu0 %v284
      %1848 = vmatpush1.msra.mxu0 %v283
      %1849 = vmatprep.subr.mxu0 %v288
      %1850 = vmatpush1.msra.mxu0 %v287
      %1851 = vmatprep.subr.mxu0 %v292
      %1852 = vmatpush1.msra.mxu0 %v291
      %1853 = vmatprep.subr.mxu0 %v296
      %1854 = vmatpush1.msra.mxu0 %v295
      %1855 = vmatprep.subr.mxu0 %v300
      %1856 = vmatpush1.msra.mxu0 %v299
      %1857 = vmatprep.subr.mxu0 %v304
      %1858 = vmatpush1.msra.mxu0 %v303
      %1859 = vmatprep.subr.mxu0 %v308
      %1860 = vmatpush1.msra.mxu0 %v307
      %1861 = vmatprep.subr.mxu0 %v312
      %1862 = vmatpush1.msra.mxu0 %v311
      %1863 = vmatprep.subr.mxu0 %v316
      %1864 = vmatpush1.msra.mxu0 %v315
      %1865 = vmatprep.subr.mxu0 0.0
      %1866 = vmatpush1.msra.mxu0 0.0
      %1867 = vmatprep.subr.mxu0 0.0
      %1868 = vmatpush1.msra.mxu0 0.0
      %1869 = vmatprep.subr.mxu0 0.0
      %1870 = vmatpush1.msra.mxu0 0.0
      %1871 = vmatprep.subr.mxu0 0.0
      %1872 = vmatpush1.msra.mxu0 0.0
      %1873 = vmatprep.subr.mxu0 0.0
      %1874 = vmatpush1.msra.mxu0 0.0
      %1875 = vmatprep.subr.mxu0 0.0
      %1876 = vmatpush1.msra.mxu0 0.0
      %1877 = vmatprep.subr.mxu0 0.0
      %1878 = vmatpush1.msra.mxu0 0.0
      %1879 = vmatprep.subr.mxu0 0.0
      %1880 = vmatpush1.msra.mxu0 0.0
      %1881 = vmatprep.subr.mxu0 0.0
      %1882 = vmatpush1.msra.mxu0 0.0
      %1883 = vmatprep.subr.mxu0 0.0
      %1884 = vmatpush1.msra.mxu0 0.0
      %1885 = vmatprep.subr.mxu0 0.0
      %1886 = vmatpush1.msra.mxu0 0.0
      %1887 = vmatprep.subr.mxu0 0.0
      %1888 = vmatpush1.msra.mxu0 0.0
      %1889 = vmatprep.subr.mxu0 0.0
      %1890 = vmatpush1.msra.mxu0 0.0
      %1891 = vmatprep.subr.mxu0 0.0
      %1892 = vmatpush1.msra.mxu0 0.0
      %1893 = vmatprep.subr.mxu0 0.0
      %1894 = vmatpush1.msra.mxu0 0.0
      %1895 = vmatprep.subr.mxu0 0.0
      %1896 = vmatpush1.msra.mxu0 0.0
      %1897 = vmatprep.mubr.f32.mxu0 0.0
      %1898 = vmatmul.mubr.f32.gmra.mrb[0].mxu0 %v1758
      %v1899 = vpop.f32.mrb[0].mxu0
      %v1900 = vadd.f32 0.0, %v1899
      %v1901 = vpop.f32.mrb[0].mxu0
      %v1902 = vadd.f32 0.0, %v1901
      %1903 = vdwg.mxu0
      %v1908 = vcombine.low %v1829, %v1831
      %v1909 = vcombine.low %v1900, %v1902
      %v1911 = vunpack.c.l.s4 1966171168
      %v1912 = vunpack.c.0.s8 %v1911
      %v1913 = vlaneseq
      %v1914 = vshrl.u32 %v1913, 7
      %v1915 = vsub.s32 %v1912, %v1914
      %v1916 = vrot.slane %v1908, %v1915
      %v1918 = vunpack.c.l.s4 1966171168
      %v1919 = vunpack.c.0.s8 %v1918
      %v1920 = vlaneseq
      %v1921 = vshrl.u32 %v1920, 7
      %v1922 = vsub.s32 %v1919, %v1921
      %v1923 = vrot.slane %v1909, %v1922
      %v1924 = vcombine.low %v1916, %v1923
      %v1926 = vunpack.c.l.s4 1966171168
      %v1927 = vunpack.c.0.s8 %v1926
      %v1928 = vlaneseq
      %v1929 = vshrl.u32 %v1928, 7
      %v1930 = vsub.s32 %v1927, %v1929
      %v1931 = vrot.slane %v1924, %v1930
      %v1933 = vadd.f32 %v1761, %v1931
      %v1934 = vxor.u32 %v1933, 2147483648
      %v1935 = vmul.f32 %v1934, 1.442695
      %v1936 = vpow.pop %v1935
      %v1937 = vadd.f32 %v1936, 1.0
      %v1938 = vrcp.pop %v1937
      %v1939 = vmul.f32 1.0, %v1938
      %v1941 = vrot.slane %v1933, 1
      %v1943 = vxor.u32 %v1941, 2147483648
      %v1944 = vmul.f32 %v1943, 1.442695
      %v1945 = vpow.pop %v1944
      %v1946 = vadd.f32 %v1945, 1.0
      %v1947 = vrcp.pop %v1946
      %v1948 = vmul.f32 1.0, %v1947
      %v1949 = vrot.slane %v1933, 2
      %v1951 = vtanh.pop %v1949
      %v1952 = vrot.slane %v1933, 3
      %v1954 = vxor.u32 %v1952, 2147483648
      %v1955 = vmul.f32 %v1954, 1.442695
      %v1956 = vpow.pop %v1955
      %v1957 = vadd.f32 %v1956, 1.0
      %v1958 = vrcp.pop %v1957
      %v1959 = vmul.f32 1.0, %v1958
      %v1960 = vmul.f32 %v1948, %v1756
      %v1961 = vmul.f32 %v1939, %v1951
      %v1962 = vadd.f32 %v1960, %v1961
      %v1963 = vtanh.pop %v1962
      %v1964 = vmul.f32 %v1959, %v1963
      %1965 = vst [vmem:[%s240 + $0x7] sm:$0x1] %v1964
      %1966 = vst [vmem:[%s243] sm:$0x1] %v1964
      %1967 = vst [vmem:[%s246] sm:$0x1] %v1962
      %p1968 = scmp.lt.s32.totalorder %s20, 1
      %s1969 = scalar_select %p1968, %s20, 1
      %p1970 = scmp.lt.s32.totalorder %s21, 0
      %s1971 = scalar_select %p1970, %s21, 0
      %s1972 = sadd.s32 %s1971, %s1969
      %s1973 = smul.addr %s1972, 8
      %s1974 = scalar_lea.vmem %s2, %s1973
      %p1975 = scmp.lt.s32.totalorder %s20, 1
      %s1976 = scalar_select %p1975, %s20, 1
      %s1977 = scalar_lea.vmem %s3, %s1976
      %p1978 = scmp.lt.s32.totalorder %s20, 1
      %s1979 = scalar_select %p1978, %s20, 1
      %s1980 = scalar_lea.vmem %s4, %s1979
      // Predicated region
      $region33: #{_lambda_.4} parent=27 // pred_check
        %p1981 = pneg %p97
      $region34: #{_lambda_.4} parent=27 // pred_check_branch
        %1983 = sbr.rel (%p1981) target = $region36
      $region35: #{_lambda_.4} parent=27 // pred_region
        _
      $region36: #{_lambda_.4} parent=27 // pred_fallthru
        _
      // Predicated region
      $region37: #{_lambda_.4} parent=27 // pred_check
        %p1984 = pneg %p123
      $region38: #{_lambda_.4} parent=27 // pred_check_branch
        %1986 = sbr.rel (%p1984) target = $region40
      $region39: #{_lambda_.4} parent=27 // pred_region
        _
      $region40: #{_lambda_.4} parent=27 // pred_fallthru
        _
      // Predicated region
      $region41: #{_lambda_.4} parent=27 // pred_check
        %p1987 = pneg %p149
      $region42: #{_lambda_.4} parent=27 // pred_check_branch
        %1989 = sbr.rel (%p1987) target = $region44
      $region43: #{_lambda_.4} parent=27 // pred_region
        _
      $region44: #{_lambda_.4} parent=27 // pred_fallthru
        _
    $region28: #{_lambda_.4} parent=5 // pred_fallthru
      _
    %p1990 = scmp.le.s32.totalorder 2, %s11
    // Predicated region
    $region45: #{_lambda_.4} parent=5 // pred_check
      %p1991 = pneg %p1990
    $region46: #{_lambda_.4} parent=5 // pred_check_branch
      %1993 = sbr.rel (%p1991) target = $region48
    $region47: #{_lambda_.4} parent=5 // pred_region
      %s1994 = ssub.s32 %s11, 2
      // Predicated region
      $region49: #{_lambda_.4} parent=47 // pred_check
        %p1995 = pneg %p103
      $region50: #{_lambda_.4} parent=47 // pred_check_branch
        %1997 = sbr.rel (%p1995) target = $region52
      $region51: #{_lambda_.4} parent=47 // pred_region
        %p1998 = scmp.lt.s32.totalorder %s22, 1
        %s1999 = scalar_select %p1998, %s22, 1
        %p2000 = scmp.lt.s32.totalorder %s23, 0
        %s2001 = scalar_select %p2000, %s23, 0
        %s2002 = sadd.s32 %s2001, %s1999
        %s2003 = smul.addr %s2002, 8
        %s2004 = scalar_lea.vmem %s2, %s2003
      $region52: #{_lambda_.4} parent=47 // pred_fallthru
        _
      // Predicated region
      $region53: #{_lambda_.4} parent=47 // pred_check
        %p2005 = pneg %p129
      $region54: #{_lambda_.4} parent=47 // pred_check_branch
        %2007 = sbr.rel (%p2005) target = $region56
      $region55: #{_lambda_.4} parent=47 // pred_region
        %p2008 = scmp.lt.s32.totalorder %s22, 1
        %s2009 = scalar_select %p2008, %s22, 1
        %s2010 = scalar_lea.vmem %s3, %s2009
      $region56: #{_lambda_.4} parent=47 // pred_fallthru
        _
      // Predicated region
      $region57: #{_lambda_.4} parent=47 // pred_check
        %p2011 = pneg %p155
      $region58: #{_lambda_.4} parent=47 // pred_check_branch
        %2013 = sbr.rel (%p2011) target = $region60
      $region59: #{_lambda_.4} parent=47 // pred_region
        %p2014 = scmp.lt.s32.totalorder %s22, 1
        %s2015 = scalar_select %p2014, %s22, 1
        %s2016 = scalar_lea.vmem %s4, %s2015
      $region60: #{_lambda_.4} parent=47 // pred_fallthru
        _
    $region48: #{_lambda_.4} parent=5 // pred_fallthru
      _
  $region6: #{_lambda_.4} parent=0 // loop_footer
    %s15 = sadd.s32 1, %s11
  $region7: #{_lambda_.4} parent=0 // loop_footer_branch
    %10 = sbr.rel target = $region3
  $region8: #{_lambda_.4} parent=0 // loop_exit
    _

</llo_original>
